<compile_context>
chip_gen: v6e
topology: v6e:2x2x1
jax: 0.10.0
libtpu: 0.0.40
codegen_flags: <defaults>
</compile_context>

<pallas_src>
import functools
import math

import jax
import jax.numpy as jnp
from jax.experimental import pallas as pl
from jax.experimental.pallas import tpu as pltpu

# ----------------------------- model dimensions -----------------------------
B = 2            # batch
S = 8            # sequence length (== max_seq_len)
D_MODEL = 32     # d_model
D_FF = 64        # d_ff
NUM_HEADS = 4
D_HEAD = D_MODEL // NUM_HEADS
LN_EPS = 1e-5


# --------------------------------- kernel -----------------------------------
def _encoder_block_kernel(batch, seq_len, num_heads, d_head, d_model, d_ff,
                          x_ref, wqkv_ref, wo_ref, w1_ref, w2_ref, vecs_ref,
                          o_ref, qkvh_ref, ctx_ref):
    x = x_ref[...]                            # (B*S, D)
    d3 = 3 * d_head

    # Packed small params (8, 128): rows = [bqkv, bo, g1, be1, b1, b2, g2, be2]
    vecs = vecs_ref[...]
    bqkv = vecs[0:1, 0:num_heads * d3]        # (1, 3*D)
    bo   = vecs[1:2, 0:d_model]
    g1   = vecs[2:3, 0:d_model]
    be1  = vecs[3:4, 0:d_model]
    b1   = vecs[4:5, 0:d_ff]
    b2   = vecs[5:6, 0:d_model]
    g2   = vecs[6:7, 0:d_model]
    be2  = vecs[7:8, 0:d_model]

    # ---- fused QKV projection: single (B*S, D) x (D, 3D) matmul -------------
    # Columns are interleaved per head: block h = [q_h | k_h | v_h] (3*Dh wide).
    qkv = jnp.dot(x, wqkv_ref[...],
                  preferred_element_type=jnp.float32) + bqkv          # (B*S, 3D)

    # ---- head split: (B*S, 3D) -> (B*H, S, 3*Dh) via VMEM scratch -----------
    # Static slice copies (B*H of them) instead of a 4-D transpose.
    for b in range(batch):
        for h in range(num_heads):
            g = b * num_heads + h
            qkvh_ref[g] = qkv[b * seq_len:(b + 1) * seq_len,
                              h * d3:(h + 1) * d3]
    qkvh = qkvh_ref[...]                      # (B*H, S, 3*Dh)
    q = qkvh[:, :, 0:d_head]
    k = qkvh[:, :, d_head:2 * d_head]
    v = qkvh[:, :, 2 * d_head:3 * d_head]

    # ---- per-batch, per-head attention (no cross-batch mask needed) ---------
    scale = 1.0 / math.sqrt(d_head)
    scores = jnp.einsum('gqd,gkd->gqk', q, k,
                        preferred_element_type=jnp.float32) * scale   # (B*H, S, S)
    scores = scores - jnp.max(scores, axis=-1, keepdims=True)
    p = jnp.exp(scores)
    p = p * pl.reciprocal(jnp.sum(p, axis=-1, keepdims=True), approx=True)
    ctx = jnp.einsum('gqk,gkd->gqd', p, v,
                     preferred_element_type=jnp.float32)              # (B*H, S, Dh)

    # ---- re-pack heads to (B*S, D) and run ONE output projection ------------
    for b in range(batch):
        for h in range(num_heads):
            g = b * num_heads + h
            ctx_ref[b * seq_len:(b + 1) * seq_len,
                    h * d_head:(h + 1) * d_head] = ctx[g]
    attn_out = jnp.dot(ctx_ref[...], wo_ref[...],
                       preferred_element_type=jnp.float32) + bo       # (B*S, D)

    def layer_norm(z, gamma, beta):
        mu = jnp.mean(z, axis=-1, keepdims=True)
        zc = z - mu
        var = jnp.mean(zc * zc, axis=-1, keepdims=True)
        return zc * jax.lax.rsqrt(var + LN_EPS) * gamma + beta

    # ---- residual + LayerNorm1 ----------------------------------------------
    norm1 = layer_norm(x + attn_out, g1, be1)

    # ---- feed-forward: Linear -> ReLU -> Linear ------------------------------
    h1 = jnp.dot(norm1, w1_ref[...], preferred_element_type=jnp.float32) + b1
    h1 = jnp.maximum(h1, 0.0)
    ff = jnp.dot(h1, w2_ref[...], preferred_element_type=jnp.float32) + b2

    # ---- residual + LayerNorm2 -----------------------------------------------
    o_ref[...] = layer_norm(ff + norm1, g2, be2).astype(o_ref.dtype)


# --------------------------------- wrapper -----------------------------------
def encoder_block(x, params):
    (wq, bq, wk, bk, wv, bv, wo, bo,
     g1, be1, w1, b1, w2, b2, g2, be2) = params
    b, s, d = x.shape
    h, dh = NUM_HEADS, D_HEAD
    d3 = 3 * dh

    # Fused QKV weight with per-head column interleave: block h = [wq_h|wk_h|wv_h].
    wqkv = jnp.concatenate(
        [wq.reshape(d, h, dh), wk.reshape(d, h, dh), wv.reshape(d, h, dh)],
        axis=-1).reshape(d, h * d3)                                   # (D, 3D)
    bqkv = jnp.concatenate(
        [bq.reshape(1, h, dh), bk.reshape(1, h, dh), bv.reshape(1, h, dh)],
        axis=-1).reshape(1, h * d3)                                   # (1, 3D)

    # Pack all tiny (1, n) params into a single lane-dense (8, 128) slab (1 vreg).
    vec_w = 128
    pad = lambda v: jnp.pad(v.reshape(1, -1),
                            ((0, 0), (0, vec_w - v.shape[-1])))
    vecs = jnp.concatenate(
        [pad(bqkv), pad(bo), pad(g1), pad(be1),
         pad(b1), pad(b2), pad(g2), pad(be2)], axis=0)                # (8, 128)

    kernel = functools.partial(_encoder_block_kernel, b, s, h, dh, d, D_FF)
    x2d = x.reshape(b * s, d)

    # Single invocation (no grid): the whole (B*S, D) slab + all weights fit easily
    # in VMEM on v5e/v6e/v7x, so every operand uses a whole-array block. Two small
    # VMEM scratches hold the per-(batch,head) QKV layout and the re-packed context.
    out2d = pl.pallas_call(
        kernel,
        out_shape=jax.ShapeDtypeStruct((b * s, d), x.dtype),
        scratch_shapes=[pltpu.VMEM((b * h, s, d3), jnp.float32),
                        pltpu.VMEM((b * s, d), jnp.float32)],
    )(x2d, wqkv, wo, w1, w2, vecs)
    return out2d.reshape(b, s, d)


# ------------------------------ JAX reference --------------------------------
def encoder_block_ref(x, params):
    (wq, bq, wk, bk, wv, bv, wo, bo,
     g1, be1, w1, b1, w2, b2, g2, be2) = params

    def ln(z, g, b):
        mu = jnp.mean(z, axis=-1, keepdims=True)
        var = jnp.mean((z - mu) ** 2, axis=-1, keepdims=True)
        return (z - mu) / jnp.sqrt(var + LN_EPS) * g + b

    q = x @ wq + bq
    k = x @ wk + bk
    v = x @ wv + bv
    bsz, s, d = x.shape
    q = q.reshape(bsz, s, NUM_HEADS, D_HEAD).transpose(0, 2, 1, 3)
    k = k.reshape(bsz, s, NUM_HEADS, D_HEAD).transpose(0, 2, 1, 3)
    v = v.reshape(bsz, s, NUM_HEADS, D_HEAD).transpose(0, 2, 1, 3)
    scores = jnp.einsum("bhqd,bhkd->bhqk", q, k) / math.sqrt(D_HEAD)
    p = jax.nn.softmax(scores, axis=-1)
    attn = jnp.einsum("bhqk,bhkd->bhqd", p, v).transpose(0, 2, 1, 3).reshape(bsz, s, d)
    attn_out = attn @ wo + bo
    n1 = ln(x + attn_out, g1, be1)
    ff = jnp.maximum(n1 @ w1 + b1, 0.0) @ w2 + b2
    return ln(ff + n1, g2, be2)


# --------------------------------- params ------------------------------------
def init_params(key):
    ks = jax.random.split(key, 8)
    scale = 0.05
    wq = scale * jax.random.normal(ks[0], (D_MODEL, D_MODEL), jnp.float32)
    wk = scale * jax.random.normal(ks[1], (D_MODEL, D_MODEL), jnp.float32)
    wv = scale * jax.random.normal(ks[2], (D_MODEL, D_MODEL), jnp.float32)
    wo = scale * jax.random.normal(ks[3], (D_MODEL, D_MODEL), jnp.float32)
    bq = scale * jax.random.normal(ks[4], (1, D_MODEL), jnp.float32)
    bk = jnp.zeros((1, D_MODEL), jnp.float32)
    bv = jnp.zeros((1, D_MODEL), jnp.float32)
    bo = jnp.zeros((1, D_MODEL), jnp.float32)
    g1 = jnp.ones((1, D_MODEL), jnp.float32)
    be1 = jnp.zeros((1, D_MODEL), jnp.float32)
    w1 = scale * jax.random.normal(ks[5], (D_MODEL, D_FF), jnp.float32)
    b1 = scale * jax.random.normal(ks[6], (1, D_FF), jnp.float32)
    w2 = scale * jax.random.normal(ks[7], (D_FF, D_MODEL), jnp.float32)
    b2 = jnp.zeros((1, D_MODEL), jnp.float32)
    g2 = jnp.ones((1, D_MODEL), jnp.float32)
    be2 = jnp.zeros((1, D_MODEL), jnp.float32)
    return (wq, bq, wk, bk, wv, bv, wo, bo,
            g1, be1, w1, b1, w2, b2, g2, be2)


if __name__ == "__main__":
    key = jax.random.PRNGKey(0)
    kx, kp = jax.random.split(key)
    x = jax.random.normal(kx, (B, S, D_MODEL), jnp.float32)
    params = init_params(kp)

    out = encoder_block(x, params)
    out = jax.block_until_ready(out)

    ref = encoder_block_ref(x, params)
    assert out.shape == (B, S, D_MODEL)
    # Tolerance 1e-3 covers the EUP-approximate softmax reciprocal.
    assert jnp.allclose(out, ref, atol=1e-3, rtol=1e-3), (
        f"max abs diff = {jnp.max(jnp.abs(out - ref))}")
    print("KERNEL_OK")
</pallas_src>

<mosaic_0001>
module attributes {stable_mosaic.version = 11 : i64} {
  func.func @_encoder_block_kernel(%arg0: memref<16x32xf32, #tpu.memory_space<vmem>>, %arg1: memref<32x96xf32, #tpu.memory_space<vmem>>, %arg2: memref<32x32xf32, #tpu.memory_space<vmem>>, %arg3: memref<32x64xf32, #tpu.memory_space<vmem>>, %arg4: memref<64x32xf32, #tpu.memory_space<vmem>>, %arg5: memref<8x128xf32, #tpu.memory_space<vmem>>, %arg6: memref<16x32xf32, #tpu.memory_space<vmem>>, %arg7: memref<8x8x24xf32, #tpu.memory_space<vmem>>, %arg8: memref<16x32xf32, #tpu.memory_space<vmem>>) attributes {dimension_semantics = [], scalar_prefetch = 0 : i64, scratch_operands = 2 : i64, tpu.core_type = #tpu.core_type<tc>} {
    %c0 = arith.constant 0 : index
    %c0_0 = arith.constant 0 : index
    %0 = vector.load %arg0[%c0, %c0_0] : memref<16x32xf32, #tpu.memory_space<vmem>>, vector<16x32xf32>
    %c0_1 = arith.constant 0 : index
    %c0_2 = arith.constant 0 : index
    %1 = vector.load %arg5[%c0_1, %c0_2] : memref<8x128xf32, #tpu.memory_space<vmem>>, vector<8x128xf32>
    %2 = vector.extract_strided_slice %1 {offsets = [0, 0], sizes = [1, 96], strides = [1, 1]} : vector<8x128xf32> to vector<1x96xf32>
    %3 = vector.extract_strided_slice %1 {offsets = [1, 0], sizes = [1, 32], strides = [1, 1]} : vector<8x128xf32> to vector<1x32xf32>
    %4 = vector.extract_strided_slice %1 {offsets = [2, 0], sizes = [1, 32], strides = [1, 1]} : vector<8x128xf32> to vector<1x32xf32>
    %5 = vector.extract_strided_slice %1 {offsets = [3, 0], sizes = [1, 32], strides = [1, 1]} : vector<8x128xf32> to vector<1x32xf32>
    %6 = vector.extract_strided_slice %1 {offsets = [4, 0], sizes = [1, 64], strides = [1, 1]} : vector<8x128xf32> to vector<1x64xf32>
    %7 = vector.extract_strided_slice %1 {offsets = [5, 0], sizes = [1, 32], strides = [1, 1]} : vector<8x128xf32> to vector<1x32xf32>
    %8 = vector.extract_strided_slice %1 {offsets = [6, 0], sizes = [1, 32], strides = [1, 1]} : vector<8x128xf32> to vector<1x32xf32>
    %9 = vector.extract_strided_slice %1 {offsets = [7, 0], sizes = [1, 32], strides = [1, 1]} : vector<8x128xf32> to vector<1x32xf32>
    %c0_3 = arith.constant 0 : index
    %c0_4 = arith.constant 0 : index
    %10 = vector.load %arg1[%c0_3, %c0_4] : memref<32x96xf32, #tpu.memory_space<vmem>>, vector<32x96xf32>
    %cst = arith.constant dense<0.000000e+00> : vector<16x96xf32>
    %11 = tpu.matmul %0, %10, %cst {dimension_numbers = #tpu.dot_dimension_numbers<[1], [0], [0], [1], [0, 0, 1, 1], [], []>} : vector<16x32xf32>, vector<32x96xf32>, vector<16x96xf32> -> vector<16x96xf32>
    %12 = vector.broadcast %2 : vector<1x96xf32> to vector<16x96xf32>
    %13 = arith.addf %11, %12 : vector<16x96xf32>
    %14 = vector.extract_strided_slice %13 {offsets = [0, 0], sizes = [8, 24], strides = [1, 1]} : vector<16x96xf32> to vector<8x24xf32>
    %c0_5 = arith.constant 0 : index
    %c0_6 = arith.constant 0 : index
    %c0_7 = arith.constant 0 : index
    %15 = vector.load %arg7[%c0_5, %c0_6, %c0_7] : memref<8x8x24xf32, #tpu.memory_space<vmem>>, vector<1x8x24xf32>
    %16 = vector.shape_cast %15 : vector<1x8x24xf32> to vector<8x24xf32>
    %17 = vector.shape_cast %14 : vector<8x24xf32> to vector<1x8x24xf32>
    tpu.vector_store %arg7[%c0_5, %c0_6, %c0_7], %17 {strides = array<i32>} : memref<8x8x24xf32, #tpu.memory_space<vmem>>, vector<1x8x24xf32>,
    %18 = vector.extract_strided_slice %13 {offsets = [0, 24], sizes = [8, 24], strides = [1, 1]} : vector<16x96xf32> to vector<8x24xf32>
    %c1 = arith.constant 1 : index
    %c0_8 = arith.constant 0 : index
    %c0_9 = arith.constant 0 : index
    %19 = vector.load %arg7[%c1, %c0_8, %c0_9] : memref<8x8x24xf32, #tpu.memory_space<vmem>>, vector<1x8x24xf32>
    %20 = vector.shape_cast %19 : vector<1x8x24xf32> to vector<8x24xf32>
    %21 = vector.shape_cast %18 : vector<8x24xf32> to vector<1x8x24xf32>
    tpu.vector_store %arg7[%c1, %c0_8, %c0_9], %21 {strides = array<i32>} : memref<8x8x24xf32, #tpu.memory_space<vmem>>, vector<1x8x24xf32>,
    %22 = vector.extract_strided_slice %13 {offsets = [0, 48], sizes = [8, 24], strides = [1, 1]} : vector<16x96xf32> to vector<8x24xf32>
    %c2 = arith.constant 2 : index
    %c0_10 = arith.constant 0 : index
    %c0_11 = arith.constant 0 : index
    %23 = vector.load %arg7[%c2, %c0_10, %c0_11] : memref<8x8x24xf32, #tpu.memory_space<vmem>>, vector<1x8x24xf32>
    %24 = vector.shape_cast %23 : vector<1x8x24xf32> to vector<8x24xf32>
    %25 = vector.shape_cast %22 : vector<8x24xf32> to vector<1x8x24xf32>
    tpu.vector_store %arg7[%c2, %c0_10, %c0_11], %25 {strides = array<i32>} : memref<8x8x24xf32, #tpu.memory_space<vmem>>, vector<1x8x24xf32>,
    %26 = vector.extract_strided_slice %13 {offsets = [0, 72], sizes = [8, 24], strides = [1, 1]} : vector<16x96xf32> to vector<8x24xf32>
    %c3 = arith.constant 3 : index
    %c0_12 = arith.constant 0 : index
    %c0_13 = arith.constant 0 : index
    %27 = vector.load %arg7[%c3, %c0_12, %c0_13] : memref<8x8x24xf32, #tpu.memory_space<vmem>>, vector<1x8x24xf32>
    %28 = vector.shape_cast %27 : vector<1x8x24xf32> to vector<8x24xf32>
    %29 = vector.shape_cast %26 : vector<8x24xf32> to vector<1x8x24xf32>
    tpu.vector_store %arg7[%c3, %c0_12, %c0_13], %29 {strides = array<i32>} : memref<8x8x24xf32, #tpu.memory_space<vmem>>, vector<1x8x24xf32>,
    %30 = vector.extract_strided_slice %13 {offsets = [8, 0], sizes = [8, 24], strides = [1, 1]} : vector<16x96xf32> to vector<8x24xf32>
    %c4 = arith.constant 4 : index
    %c0_14 = arith.constant 0 : index
    %c0_15 = arith.constant 0 : index
    %31 = vector.load %arg7[%c4, %c0_14, %c0_15] : memref<8x8x24xf32, #tpu.memory_space<vmem>>, vector<1x8x24xf32>
    %32 = vector.shape_cast %31 : vector<1x8x24xf32> to vector<8x24xf32>
    %33 = vector.shape_cast %30 : vector<8x24xf32> to vector<1x8x24xf32>
    tpu.vector_store %arg7[%c4, %c0_14, %c0_15], %33 {strides = array<i32>} : memref<8x8x24xf32, #tpu.memory_space<vmem>>, vector<1x8x24xf32>,
    %34 = vector.extract_strided_slice %13 {offsets = [8, 24], sizes = [8, 24], strides = [1, 1]} : vector<16x96xf32> to vector<8x24xf32>
    %c5 = arith.constant 5 : index
    %c0_16 = arith.constant 0 : index
    %c0_17 = arith.constant 0 : index
    %35 = vector.load %arg7[%c5, %c0_16, %c0_17] : memref<8x8x24xf32, #tpu.memory_space<vmem>>, vector<1x8x24xf32>
    %36 = vector.shape_cast %35 : vector<1x8x24xf32> to vector<8x24xf32>
    %37 = vector.shape_cast %34 : vector<8x24xf32> to vector<1x8x24xf32>
    tpu.vector_store %arg7[%c5, %c0_16, %c0_17], %37 {strides = array<i32>} : memref<8x8x24xf32, #tpu.memory_space<vmem>>, vector<1x8x24xf32>,
    %38 = vector.extract_strided_slice %13 {offsets = [8, 48], sizes = [8, 24], strides = [1, 1]} : vector<16x96xf32> to vector<8x24xf32>
    %c6 = arith.constant 6 : index
    %c0_18 = arith.constant 0 : index
    %c0_19 = arith.constant 0 : index
    %39 = vector.load %arg7[%c6, %c0_18, %c0_19] : memref<8x8x24xf32, #tpu.memory_space<vmem>>, vector<1x8x24xf32>
    %40 = vector.shape_cast %39 : vector<1x8x24xf32> to vector<8x24xf32>
    %41 = vector.shape_cast %38 : vector<8x24xf32> to vector<1x8x24xf32>
    tpu.vector_store %arg7[%c6, %c0_18, %c0_19], %41 {strides = array<i32>} : memref<8x8x24xf32, #tpu.memory_space<vmem>>, vector<1x8x24xf32>,
    %42 = vector.extract_strided_slice %13 {offsets = [8, 72], sizes = [8, 24], strides = [1, 1]} : vector<16x96xf32> to vector<8x24xf32>
    %c7 = arith.constant 7 : index
    %c0_20 = arith.constant 0 : index
    %c0_21 = arith.constant 0 : index
    %43 = vector.load %arg7[%c7, %c0_20, %c0_21] : memref<8x8x24xf32, #tpu.memory_space<vmem>>, vector<1x8x24xf32>
    %44 = vector.shape_cast %43 : vector<1x8x24xf32> to vector<8x24xf32>
    %45 = vector.shape_cast %42 : vector<8x24xf32> to vector<1x8x24xf32>
    tpu.vector_store %arg7[%c7, %c0_20, %c0_21], %45 {strides = array<i32>} : memref<8x8x24xf32, #tpu.memory_space<vmem>>, vector<1x8x24xf32>,
    %c0_22 = arith.constant 0 : index
    %c0_23 = arith.constant 0 : index
    %c0_24 = arith.constant 0 : index
    %46 = vector.load %arg7[%c0_22, %c0_23, %c0_24] : memref<8x8x24xf32, #tpu.memory_space<vmem>>, vector<8x8x24xf32>
    %47 = vector.extract_strided_slice %46 {offsets = [0, 0, 0], sizes = [8, 8, 8], strides = [1, 1, 1]} : vector<8x8x24xf32> to vector<8x8x8xf32>
    %48 = vector.extract_strided_slice %46 {offsets = [0, 0, 8], sizes = [8, 8, 8], strides = [1, 1, 1]} : vector<8x8x24xf32> to vector<8x8x8xf32>
    %49 = vector.extract_strided_slice %46 {offsets = [0, 0, 16], sizes = [8, 8, 8], strides = [1, 1, 1]} : vector<8x8x24xf32> to vector<8x8x8xf32>
    "tpu.trace_start"() <{level = 10 : i32, message = "gqd,gkd->gqk"}> : () -> ()
    %cst_25 = arith.constant dense<0.000000e+00> : vector<8x8x8xf32>
    %50 = tpu.matmul %47, %48, %cst_25 {dimension_numbers = #tpu.dot_dimension_numbers<[2], [2], [1], [1], [0, 0, 0, 1, 1, 1], [0], [0]>} : vector<8x8x8xf32>, vector<8x8x8xf32>, vector<8x8x8xf32> -> vector<8x8x8xf32>
    "tpu.trace_stop"() : () -> ()
    %cst_26 = arith.constant 0.353553385 : f32
    %51 = vector.broadcast %cst_26 : f32 to vector<8x8x8xf32>
    %52 = arith.mulf %50, %51 : vector<8x8x8xf32>
    %cst_27 = arith.constant dense<0xFF800000> : vector<8x8xf32>
    %53 = vector.multi_reduction <maximumf>, %52, %cst_27 [2] : vector<8x8x8xf32> to vector<8x8xf32>
    %54 = vector.shape_cast %53 : vector<8x8xf32> to vector<8x8x1xf32>
    %55 = vector.broadcast %54 : vector<8x8x1xf32> to vector<8x8x8xf32>
    %56 = arith.subf %52, %55 : vector<8x8x8xf32>
    %57 = math.exp %56 : vector<8x8x8xf32>
    %cst_28 = arith.constant dense<0.000000e+00> : vector<8x8xf32>
    %58 = vector.multi_reduction <add>, %57, %cst_28 [2] : vector<8x8x8xf32> to vector<8x8xf32>
    %59 = vector.shape_cast %58 : vector<8x8xf32> to vector<8x8x1xf32>
    %60 = tpu.reciprocal %59 {approx = true} : vector<8x8x1xf32> -> vector<8x8x1xf32>
    %61 = vector.broadcast %60 : vector<8x8x1xf32> to vector<8x8x8xf32>
    %62 = arith.mulf %57, %61 : vector<8x8x8xf32>
    "tpu.trace_start"() <{level = 10 : i32, message = "gqk,gkd->gqd"}> : () -> ()
    %cst_29 = arith.constant dense<0.000000e+00> : vector<8x8x8xf32>
    %63 = tpu.matmul %62, %49, %cst_29 {dimension_numbers = #tpu.dot_dimension_numbers<[2], [1], [1], [2], [0, 0, 0, 1, 1, 2], [0], [0]>} : vector<8x8x8xf32>, vector<8x8x8xf32>, vector<8x8x8xf32> -> vector<8x8x8xf32>
    "tpu.trace_stop"() : () -> ()
    %64 = vector.extract_strided_slice %63 {offsets = [0, 0, 0], sizes = [1, 8, 8], strides = [1, 1, 1]} : vector<8x8x8xf32> to vector<1x8x8xf32>
    %65 = vector.shape_cast %64 : vector<1x8x8xf32> to vector<8x8xf32>
    %c0_30 = arith.constant 0 : index
    %c0_31 = arith.constant 0 : index
    %66 = vector.load %arg8[%c0_30, %c0_31] : memref<16x32xf32, #tpu.memory_space<vmem>>, vector<8x8xf32>
    tpu.vector_store %arg8[%c0_30, %c0_31], %65 {strides = array<i32>} : memref<16x32xf32, #tpu.memory_space<vmem>>, vector<8x8xf32>,
    %67 = vector.extract_strided_slice %63 {offsets = [1, 0, 0], sizes = [1, 8, 8], strides = [1, 1, 1]} : vector<8x8x8xf32> to vector<1x8x8xf32>
    %68 = vector.shape_cast %67 : vector<1x8x8xf32> to vector<8x8xf32>
    %c0_32 = arith.constant 0 : index
    %c8 = arith.constant 8 : index
    %69 = vector.load %arg8[%c0_32, %c8] : memref<16x32xf32, #tpu.memory_space<vmem>>, vector<8x8xf32>
    tpu.vector_store %arg8[%c0_32, %c8], %68 {strides = array<i32>} : memref<16x32xf32, #tpu.memory_space<vmem>>, vector<8x8xf32>,
    %70 = vector.extract_strided_slice %63 {offsets = [2, 0, 0], sizes = [1, 8, 8], strides = [1, 1, 1]} : vector<8x8x8xf32> to vector<1x8x8xf32>
    %71 = vector.shape_cast %70 : vector<1x8x8xf32> to vector<8x8xf32>
    %c0_33 = arith.constant 0 : index
    %c16 = arith.constant 16 : index
    %72 = vector.load %arg8[%c0_33, %c16] : memref<16x32xf32, #tpu.memory_space<vmem>>, vector<8x8xf32>
    tpu.vector_store %arg8[%c0_33, %c16], %71 {strides = array<i32>} : memref<16x32xf32, #tpu.memory_space<vmem>>, vector<8x8xf32>,
    %73 = vector.extract_strided_slice %63 {offsets = [3, 0, 0], sizes = [1, 8, 8], strides = [1, 1, 1]} : vector<8x8x8xf32> to vector<1x8x8xf32>
    %74 = vector.shape_cast %73 : vector<1x8x8xf32> to vector<8x8xf32>
    %c0_34 = arith.constant 0 : index
    %c24 = arith.constant 24 : index
    %75 = vector.load %arg8[%c0_34, %c24] : memref<16x32xf32, #tpu.memory_space<vmem>>, vector<8x8xf32>
    tpu.vector_store %arg8[%c0_34, %c24], %74 {strides = array<i32>} : memref<16x32xf32, #tpu.memory_space<vmem>>, vector<8x8xf32>,
    %76 = vector.extract_strided_slice %63 {offsets = [4, 0, 0], sizes = [1, 8, 8], strides = [1, 1, 1]} : vector<8x8x8xf32> to vector<1x8x8xf32>
    %77 = vector.shape_cast %76 : vector<1x8x8xf32> to vector<8x8xf32>
    %c8_35 = arith.constant 8 : index
    %c0_36 = arith.constant 0 : index
    %78 = vector.load %arg8[%c8_35, %c0_36] : memref<16x32xf32, #tpu.memory_space<vmem>>, vector<8x8xf32>
    tpu.vector_store %arg8[%c8_35, %c0_36], %77 {strides = array<i32>} : memref<16x32xf32, #tpu.memory_space<vmem>>, vector<8x8xf32>,
    %79 = vector.extract_strided_slice %63 {offsets = [5, 0, 0], sizes = [1, 8, 8], strides = [1, 1, 1]} : vector<8x8x8xf32> to vector<1x8x8xf32>
    %80 = vector.shape_cast %79 : vector<1x8x8xf32> to vector<8x8xf32>
    %c8_37 = arith.constant 8 : index
    %c8_38 = arith.constant 8 : index
    %81 = vector.load %arg8[%c8_37, %c8_38] : memref<16x32xf32, #tpu.memory_space<vmem>>, vector<8x8xf32>
    tpu.vector_store %arg8[%c8_37, %c8_38], %80 {strides = array<i32>} : memref<16x32xf32, #tpu.memory_space<vmem>>, vector<8x8xf32>,
    %82 = vector.extract_strided_slice %63 {offsets = [6, 0, 0], sizes = [1, 8, 8], strides = [1, 1, 1]} : vector<8x8x8xf32> to vector<1x8x8xf32>
    %83 = vector.shape_cast %82 : vector<1x8x8xf32> to vector<8x8xf32>
    %c8_39 = arith.constant 8 : index
    %c16_40 = arith.constant 16 : index
    %84 = vector.load %arg8[%c8_39, %c16_40] : memref<16x32xf32, #tpu.memory_space<vmem>>, vector<8x8xf32>
    tpu.vector_store %arg8[%c8_39, %c16_40], %83 {strides = array<i32>} : memref<16x32xf32, #tpu.memory_space<vmem>>, vector<8x8xf32>,
    %85 = vector.extract_strided_slice %63 {offsets = [7, 0, 0], sizes = [1, 8, 8], strides = [1, 1, 1]} : vector<8x8x8xf32> to vector<1x8x8xf32>
    %86 = vector.shape_cast %85 : vector<1x8x8xf32> to vector<8x8xf32>
    %c8_41 = arith.constant 8 : index
    %c24_42 = arith.constant 24 : index
    %87 = vector.load %arg8[%c8_41, %c24_42] : memref<16x32xf32, #tpu.memory_space<vmem>>, vector<8x8xf32>
    tpu.vector_store %arg8[%c8_41, %c24_42], %86 {strides = array<i32>} : memref<16x32xf32, #tpu.memory_space<vmem>>, vector<8x8xf32>,
    %c0_43 = arith.constant 0 : index
    %c0_44 = arith.constant 0 : index
    %88 = vector.load %arg8[%c0_43, %c0_44] : memref<16x32xf32, #tpu.memory_space<vmem>>, vector<16x32xf32>
    %c0_45 = arith.constant 0 : index
    %c0_46 = arith.constant 0 : index
    %89 = vector.load %arg2[%c0_45, %c0_46] : memref<32x32xf32, #tpu.memory_space<vmem>>, vector<32x32xf32>
    %cst_47 = arith.constant dense<0.000000e+00> : vector<16x32xf32>
    %90 = tpu.matmul %88, %89, %cst_47 {dimension_numbers = #tpu.dot_dimension_numbers<[1], [0], [0], [1], [0, 0, 1, 1], [], []>} : vector<16x32xf32>, vector<32x32xf32>, vector<16x32xf32> -> vector<16x32xf32>
    %91 = vector.broadcast %3 : vector<1x32xf32> to vector<16x32xf32>
    %92 = arith.addf %90, %91 : vector<16x32xf32>
    %93 = arith.addf %0, %92 : vector<16x32xf32>
    %cst_48 = arith.constant dense<0.000000e+00> : vector<16xf32>
    %94 = vector.multi_reduction <add>, %93, %cst_48 [1] : vector<16x32xf32> to vector<16xf32>
    %95 = vector.shape_cast %94 : vector<16xf32> to vector<16x1xf32>
    %cst_49 = arith.constant 3.200000e+01 : f32
    %96 = vector.broadcast %cst_49 : f32 to vector<16x1xf32>
    %97 = arith.divf %95, %96 : vector<16x1xf32>
    %98 = vector.broadcast %97 : vector<16x1xf32> to vector<16x32xf32>
    %99 = arith.subf %93, %98 : vector<16x32xf32>
    %100 = arith.mulf %99, %99 : vector<16x32xf32>
    %cst_50 = arith.constant dense<0.000000e+00> : vector<16xf32>
    %101 = vector.multi_reduction <add>, %100, %cst_50 [1] : vector<16x32xf32> to vector<16xf32>
    %102 = vector.shape_cast %101 : vector<16xf32> to vector<16x1xf32>
    %cst_51 = arith.constant 3.200000e+01 : f32
    %103 = vector.broadcast %cst_51 : f32 to vector<16x1xf32>
    %104 = arith.divf %102, %103 : vector<16x1xf32>
    %cst_52 = arith.constant 9.99999974E-6 : f32
    %105 = vector.broadcast %cst_52 : f32 to vector<16x1xf32>
    %106 = arith.addf %104, %105 : vector<16x1xf32>
    %107 = math.rsqrt %106 : vector<16x1xf32>
    %108 = vector.broadcast %107 : vector<16x1xf32> to vector<16x32xf32>
    %109 = arith.mulf %99, %108 : vector<16x32xf32>
    %110 = vector.broadcast %4 : vector<1x32xf32> to vector<16x32xf32>
    %111 = arith.mulf %109, %110 : vector<16x32xf32>
    %112 = vector.broadcast %5 : vector<1x32xf32> to vector<16x32xf32>
    %113 = arith.addf %111, %112 : vector<16x32xf32>
    %c0_53 = arith.constant 0 : index
    %c0_54 = arith.constant 0 : index
    %114 = vector.load %arg3[%c0_53, %c0_54] : memref<32x64xf32, #tpu.memory_space<vmem>>, vector<32x64xf32>
    %cst_55 = arith.constant dense<0.000000e+00> : vector<16x64xf32>
    %115 = tpu.matmul %113, %114, %cst_55 {dimension_numbers = #tpu.dot_dimension_numbers<[1], [0], [0], [1], [0, 0, 1, 1], [], []>} : vector<16x32xf32>, vector<32x64xf32>, vector<16x64xf32> -> vector<16x64xf32>
    %116 = vector.broadcast %6 : vector<1x64xf32> to vector<16x64xf32>
    %117 = arith.addf %115, %116 : vector<16x64xf32>
    %cst_56 = arith.constant 0.000000e+00 : f32
    %118 = vector.broadcast %cst_56 : f32 to vector<16x64xf32>
    %119 = arith.maximumf %117, %118 : vector<16x64xf32>
    %c0_57 = arith.constant 0 : index
    %c0_58 = arith.constant 0 : index
    %120 = vector.load %arg4[%c0_57, %c0_58] : memref<64x32xf32, #tpu.memory_space<vmem>>, vector<64x32xf32>
    %cst_59 = arith.constant dense<0.000000e+00> : vector<16x32xf32>
    %121 = tpu.matmul %119, %120, %cst_59 {dimension_numbers = #tpu.dot_dimension_numbers<[1], [0], [0], [1], [0, 0, 1, 1], [], []>} : vector<16x64xf32>, vector<64x32xf32>, vector<16x32xf32> -> vector<16x32xf32>
    %122 = vector.broadcast %7 : vector<1x32xf32> to vector<16x32xf32>
    %123 = arith.addf %121, %122 : vector<16x32xf32>
    %124 = arith.addf %123, %113 : vector<16x32xf32>
    %cst_60 = arith.constant dense<0.000000e+00> : vector<16xf32>
    %125 = vector.multi_reduction <add>, %124, %cst_60 [1] : vector<16x32xf32> to vector<16xf32>
    %126 = vector.shape_cast %125 : vector<16xf32> to vector<16x1xf32>
    %cst_61 = arith.constant 3.200000e+01 : f32
    %127 = vector.broadcast %cst_61 : f32 to vector<16x1xf32>
    %128 = arith.divf %126, %127 : vector<16x1xf32>
    %129 = vector.broadcast %128 : vector<16x1xf32> to vector<16x32xf32>
    %130 = arith.subf %124, %129 : vector<16x32xf32>
    %131 = arith.mulf %130, %130 : vector<16x32xf32>
    %cst_62 = arith.constant dense<0.000000e+00> : vector<16xf32>
    %132 = vector.multi_reduction <add>, %131, %cst_62 [1] : vector<16x32xf32> to vector<16xf32>
    %133 = vector.shape_cast %132 : vector<16xf32> to vector<16x1xf32>
    %cst_63 = arith.constant 3.200000e+01 : f32
    %134 = vector.broadcast %cst_63 : f32 to vector<16x1xf32>
    %135 = arith.divf %133, %134 : vector<16x1xf32>
    %cst_64 = arith.constant 9.99999974E-6 : f32
    %136 = vector.broadcast %cst_64 : f32 to vector<16x1xf32>
    %137 = arith.addf %135, %136 : vector<16x1xf32>
    %138 = math.rsqrt %137 : vector<16x1xf32>
    %139 = vector.broadcast %138 : vector<16x1xf32> to vector<16x32xf32>
    %140 = arith.mulf %130, %139 : vector<16x32xf32>
    %141 = vector.broadcast %8 : vector<1x32xf32> to vector<16x32xf32>
    %142 = arith.mulf %140, %141 : vector<16x32xf32>
    %143 = vector.broadcast %9 : vector<1x32xf32> to vector<16x32xf32>
    %144 = arith.addf %142, %143 : vector<16x32xf32>
    %c0_65 = arith.constant 0 : index
    %c0_66 = arith.constant 0 : index
    %145 = vector.load %arg6[%c0_65, %c0_66] : memref<16x32xf32, #tpu.memory_space<vmem>>, vector<16x32xf32>
    tpu.vector_store %arg6[%c0_65, %c0_66], %144 {strides = array<i32>} : memref<16x32xf32, #tpu.memory_space<vmem>>, vector<16x32xf32>,
    return
  }
}

</mosaic_0001>

<llo_original>
// kernel: tpu_custom_call.1
$region0: #{tpu_custom_call.1}
  #allocation0 [shape = 'u32[]', space=smem, size = 0x4, offset = 0x4, fixed_abs, tag = 'smem constant byte address 0x4 - core index']
  #allocation1 [shape = 'u32[144,128]{1,0:T(1,128)}', space=vmem, size = 0x12000, scoped, tag = 'internal scratch']
  #allocation2 [shape = 'f32[8,8,24]{2,1,0:T(8,128)}', space=vmem, size = 0x8000, scoped, tag = 'scratch operand']
  #allocation3 [shape = 'f32[16,32]{1,0:T(8,128)}', space=vmem, size = 0x2000, scoped, tag = 'scratch operand']
  %s0 = inlined_call_operand.hbm [shape: f32[16,32], index: 0, kind: input, shape index: {}]
  %s1 = inlined_call_operand.vmem [shape: f32[32,96], index: 1, kind: input, shape index: {}]
  %s2 = inlined_call_operand.vmem [shape: f32[32,32], index: 2, kind: input, shape index: {}]
  %s3 = inlined_call_operand.vmem [shape: f32[32,64], index: 3, kind: input, shape index: {}]
  %s4 = inlined_call_operand.vmem [shape: f32[64,32], index: 4, kind: input, shape index: {}]
  %s5 = inlined_call_operand.vmem [shape: f32[8,128], index: 5, kind: input, shape index: {}]
  %s6 = inlined_call_operand.hbm [shape: f32[16,32], index: 6, kind: output, shape index: {}]
  %s7 = sld [smem:[#allocation0]]
  $region38: #{tpu_custom_call.1} parent=0
    _
  %s9 = ssub.s32 1, %s7
  %s10 = scalar_select 0, %s9, %s7
  $region1: #{tpu_custom_call.1} parent=0
    #allocation4 [shape = 'u8[8192]{0}', space=vmem, size = 0x2000, scoped, tag = 'input window, operand 0, single buffered']
    #allocation5 [shape = 's32[1]{0}', space=sflag, size = 0x4, scoped, tag = 'scoped memory for tpu_custom_call.1']
    #allocation6 [shape = 's32[1]{0}', space=sflag, size = 0x4, scoped, tag = 'scoped memory for tpu_custom_call.1']
    #allocation7 [shape = 'u8[8192]{0}', space=vmem, size = 0x2000, scoped, tag = 'output window, operand 0, single buffered']
    %11 = vsyncpa [#allocation5], 0
    %12 = vsyncpa [#allocation6], 0
    // Predicated region
    $region2: #{tpu_custom_call.1} parent=1 // pred_check
      _
    $region3: #{tpu_custom_call.1} parent=1 // pred_check_branch
      %14 = sbr.rel (0) target = $region5
    $region4: #{tpu_custom_call.1} parent=1 // pred_region
      %s16 = ssub.s32 256, 256
      %17 = vsyncadd [#allocation5], %s16
      %s18 = sshll.u32 [#allocation4], 4
      %s19 = int_to_ptr.vmem [resolvable:$true] %s18
      %24 = dma.hbm_to_vmem [thread:$0]  %s0, 256, %s19, [#allocation5], 128, 128, 8
    $region5: #{tpu_custom_call.1} parent=1 // pred_fallthru
      _
    // Predicated region
    $region6: #{tpu_custom_call.1} parent=1 // pred_check
      _
    $region7: #{tpu_custom_call.1} parent=1 // pred_check_branch
      %26 = sbr.rel (0) target = $region9
    $region8: #{tpu_custom_call.1} parent=1 // pred_region
      _
    $region9: #{tpu_custom_call.1} parent=1 // pred_fallthru
      _
    // Predicated region
    $region10: #{tpu_custom_call.1} parent=1 // pred_check
      _
    $region11: #{tpu_custom_call.1} parent=1 // pred_check_branch
      %28 = sbr.rel (0) target = $region13
    $region12: #{tpu_custom_call.1} parent=1 // pred_region
      _
    $region13: #{tpu_custom_call.1} parent=1 // pred_fallthru
      _
    // Predicated region
    $region14: #{tpu_custom_call.1} parent=1 // pred_check
      _
    $region15: #{tpu_custom_call.1} parent=1 // pred_check_branch
      %30 = sbr.rel (0) target = $region17
    $region16: #{tpu_custom_call.1} parent=1 // pred_region
      _
    $region17: #{tpu_custom_call.1} parent=1 // pred_fallthru
      _
    // Predicated region
    $region18: #{tpu_custom_call.1} parent=1 // pred_check
      _
    $region19: #{tpu_custom_call.1} parent=1 // pred_check_branch
      %32 = sbr.rel (0) target = $region21
    $region20: #{tpu_custom_call.1} parent=1 // pred_region
      _
    $region21: #{tpu_custom_call.1} parent=1 // pred_fallthru
      _
    // Predicated region
    $region22: #{tpu_custom_call.1} parent=1 // pred_check
      _
    $region23: #{tpu_custom_call.1} parent=1 // pred_check_branch
      %34 = sbr.rel (0) target = $region25
    $region24: #{tpu_custom_call.1} parent=1 // pred_region
      _
    $region25: #{tpu_custom_call.1} parent=1 // pred_fallthru
      _
    // Predicated region
    $region26: #{tpu_custom_call.1} parent=1 // pred_check
      _
    $region27: #{tpu_custom_call.1} parent=1 // pred_check_branch
      %36 = sbr.rel (0) target = $region29
    $region28: #{tpu_custom_call.1} parent=1 // pred_region
      %37 = dma.done [#allocation5], 256
    $region29: #{tpu_custom_call.1} parent=1 // pred_fallthru
      _
    %v38 = vld [vmem:[#allocation4] sm:$0xff]
    %v39 = vld [vmem:[#allocation4 + $0x8] sm:$0xff]
    %v40 = vld [vmem:[%s5] sm:$0xff]
    %v41 = vld [vmem:[%s1] sm:$0xff]
    %v42 = vld [vmem:[%s1 + $0x8] sm:$0xff]
    %v43 = vld [vmem:[%s1 + $0x10] sm:$0xff]
    %v44 = vld [vmem:[%s1 + $0x18] sm:$0xff]
    %v45 = vlaneseq
    %v46 = vshrl.u32 %v45, 7
    %v47 = vsub.s32 0, %v46
    %v48 = vrot.slane %v40, %v47
    %vm49 = vcmask 261120
    %v51 = vsel %vm49, %v38, 0
    %v54 = vsel %vm49, %v39, 0
    %56 = vmatprep.subr.mxu0 0.0
    %57 = vmatpush1.msra.mxu0 0.0
    %58 = vmatprep.subr.mxu0 0.0
    %59 = vmatpush1.msra.mxu0 0.0
    %60 = vmatprep.subr.mxu0 0.0
    %61 = vmatpush1.msra.mxu0 0.0
    %62 = vmatprep.subr.mxu0 0.0
    %63 = vmatpush1.msra.mxu0 0.0
    %64 = vmatprep.subr.mxu0 0.0
    %65 = vmatpush1.msra.mxu0 0.0
    %66 = vmatprep.subr.mxu0 0.0
    %67 = vmatpush1.msra.mxu0 0.0
    %68 = vmatprep.subr.mxu0 0.0
    %69 = vmatpush1.msra.mxu0 0.0
    %70 = vmatprep.subr.mxu0 0.0
    %71 = vmatpush1.msra.mxu0 0.0
    %72 = vmatprep.subr.mxu0 0.0
    %73 = vmatpush1.msra.mxu0 0.0
    %74 = vmatprep.subr.mxu0 0.0
    %75 = vmatpush1.msra.mxu0 0.0
    %76 = vmatprep.subr.mxu0 0.0
    %77 = vmatpush1.msra.mxu0 0.0
    %78 = vmatprep.subr.mxu0 0.0
    %79 = vmatpush1.msra.mxu0 0.0
    %80 = vmatprep.subr.mxu0 0.0
    %81 = vmatpush1.msra.mxu0 %v44
    %82 = vmatprep.subr.mxu0 0.0
    %83 = vmatpush1.msra.mxu0 %v43
    %84 = vmatprep.subr.mxu0 0.0
    %85 = vmatpush1.msra.mxu0 %v42
    %86 = vmatprep.subr.mxu0 0.0
    %87 = vmatpush1.msra.mxu0 %v41
    %88 = vmatprep.subr.mxu0 0.0
    %89 = vmatpush2.msra.mxu0 0.0
    %90 = vmatprep.subr.mxu0 0.0
    %91 = vmatpush2.msra.mxu0 0.0
    %92 = vmatprep.subr.mxu0 0.0
    %93 = vmatpush2.msra.mxu0 0.0
    %94 = vmatprep.subr.mxu0 0.0
    %95 = vmatpush2.msra.mxu0 0.0
    %96 = vmatprep.subr.mxu0 0.0
    %97 = vmatpush2.msra.mxu0 0.0
    %98 = vmatprep.subr.mxu0 0.0
    %99 = vmatpush2.msra.mxu0 0.0
    %100 = vmatprep.subr.mxu0 0.0
    %101 = vmatpush2.msra.mxu0 0.0
    %102 = vmatprep.subr.mxu0 0.0
    %103 = vmatpush2.msra.mxu0 0.0
    %104 = vmatprep.subr.mxu0 0.0
    %105 = vmatpush2.msra.mxu0 0.0
    %106 = vmatprep.subr.mxu0 0.0
    %107 = vmatpush2.msra.mxu0 0.0
    %108 = vmatprep.subr.mxu0 0.0
    %109 = vmatpush2.msra.mxu0 0.0
    %110 = vmatprep.subr.mxu0 0.0
    %111 = vmatpush2.msra.mxu0 0.0
    %112 = vmatprep.subr.mxu0 0.0
    %113 = vmatpush2.msra.mxu0 0.0
    %114 = vmatprep.subr.mxu0 0.0
    %115 = vmatpush2.msra.mxu0 0.0
    %116 = vmatprep.subr.mxu0 0.0
    %117 = vmatpush2.msra.mxu0 0.0
    %118 = vmatprep.subr.mxu0 0.0
    %119 = vmatpush2.msra.mxu0 0.0
    %120 = vmatprep.mubr.f32.mxu0 0.0
    %121 = vmatmul.mubr.f32.gmra.mxu0 %v51
    %v122 = vpop.f32.mrf.mxu0
    %v123 = vadd.f32 %v48, %v122
    %v124 = vpop.f32.mrf.mxu0
    %125 = vmatprep.mubr.f32.mxu0 0.0
    %126 = vmatmul.mubr.f32.gmra.mxu0 %v54
    %v127 = vpop.f32.mrf.mxu0
    %v128 = vadd.f32 %v48, %v127
    %v129 = vpop.f32.mrf.mxu0
    %130 = vdwg.mxu0
    %vm131 = vcmask 195584
    %132 = vst.msk [vmem:[#allocation2] sm:$0xff] %vm131, %v123
    %134 = vrot.lane.b32.xlu0 %v123, 104
    %v135 = vpop.permute.xlu0 %134
    %s137 = scalar_lea.vmem [#allocation2], 8
    %138 = vst.msk [vmem:[%s137] sm:$0xff] %vm131, %v135
    %139 = vrot.lane.b32.xlu0 %v123, 80
    %v140 = vpop.permute.xlu0 %139
    %s142 = scalar_lea.vmem [#allocation2], 16
    %143 = vst.msk [vmem:[%s142] sm:$0xff] %vm131, %v140
    %144 = vrot.lane.b32.xlu0 %v123, 56
    %v145 = vpop.permute.xlu0 %144
    %s147 = scalar_lea.vmem [#allocation2], 24
    %148 = vst.msk [vmem:[%s147] sm:$0xff] %vm131, %v145
    %s149 = scalar_lea.vmem [#allocation2], 32
    %150 = vst.msk [vmem:[%s149] sm:$0xff] %vm131, %v128
    %152 = vrot.lane.b32.xlu0 %v128, 104
    %v153 = vpop.permute.xlu0 %152
    %s155 = scalar_lea.vmem [#allocation2], 40
    %156 = vst.msk [vmem:[%s155] sm:$0xff] %vm131, %v153
    %157 = vrot.lane.b32.xlu0 %v128, 80
    %v158 = vpop.permute.xlu0 %157
    %s160 = scalar_lea.vmem [#allocation2], 48
    %161 = vst.msk [vmem:[%s160] sm:$0xff] %vm131, %v158
    %162 = vrot.lane.b32.xlu0 %v128, 56
    %v163 = vpop.permute.xlu0 %162
    %s165 = scalar_lea.vmem [#allocation2], 56
    %166 = vst.msk [vmem:[%s165] sm:$0xff] %vm131, %v163
    %v167 = vld [vmem:[#allocation2] sm:$0xff]
    %v168 = vld [vmem:[#allocation2 + $0x8] sm:$0xff]
    %v169 = vld [vmem:[#allocation2 + $0x10] sm:$0xff]
    %v170 = vld [vmem:[#allocation2 + $0x18] sm:$0xff]
    %v171 = vld [vmem:[#allocation2 + $0x20] sm:$0xff]
    %v172 = vld [vmem:[#allocation2 + $0x28] sm:$0xff]
    %v173 = vld [vmem:[#allocation2 + $0x30] sm:$0xff]
    %v174 = vld [vmem:[#allocation2 + $0x38] sm:$0xff]
    %176 = vrot.lane.b32.xlu0 %v167, 120
    %v177 = vpop.permute.xlu0 %176
    %vm178 = vcmask 64512
    %v179 = vsel %vm178, %v167, 0
    %v181 = vsel %vm178, %v177, 0
    %183 = vmatprep.subr.mxu0 0.0
    %184 = vmatpush1.xpose.msra.mxu0 0.0
    %185 = vmatprep.subr.mxu0 0.0
    %186 = vmatpush1.xpose.msra.mxu0 0.0
    %187 = vmatprep.subr.mxu0 0.0
    %188 = vmatpush1.xpose.msra.mxu0 0.0
    %189 = vmatprep.subr.mxu0 0.0
    %190 = vmatpush1.xpose.msra.mxu0 0.0
    %191 = vmatprep.subr.mxu0 0.0
    %192 = vmatpush1.xpose.msra.mxu0 0.0
    %193 = vmatprep.subr.mxu0 0.0
    %194 = vmatpush1.xpose.msra.mxu0 0.0
    %195 = vmatprep.subr.mxu0 0.0
    %196 = vmatpush1.xpose.msra.mxu0 0.0
    %197 = vmatprep.subr.mxu0 0.0
    %198 = vmatpush1.xpose.msra.mxu0 0.0
    %199 = vmatprep.subr.mxu0 0.0
    %200 = vmatpush1.xpose.msra.mxu0 0.0
    %201 = vmatprep.subr.mxu0 0.0
    %202 = vmatpush1.xpose.msra.mxu0 0.0
    %203 = vmatprep.subr.mxu0 0.0
    %204 = vmatpush1.xpose.msra.mxu0 0.0
    %205 = vmatprep.subr.mxu0 0.0
    %206 = vmatpush1.xpose.msra.mxu0 0.0
    %207 = vmatprep.subr.mxu0 0.0
    %208 = vmatpush1.xpose.msra.mxu0 0.0
    %209 = vmatprep.subr.mxu0 0.0
    %210 = vmatpush1.xpose.msra.mxu0 0.0
    %211 = vmatprep.subr.mxu0 0.0
    %212 = vmatpush1.xpose.msra.mxu0 0.0
    %213 = vmatprep.subr.mxu0 0.0
    %214 = vmatpush1.xpose.msra.mxu0 %v181
    %215 = vmatprep.subr.mxu0 0.0
    %216 = vmatpush2.xpose.msra.mxu0 0.0
    %217 = vmatprep.subr.mxu0 0.0
    %218 = vmatpush2.xpose.msra.mxu0 0.0
    %219 = vmatprep.subr.mxu0 0.0
    %220 = vmatpush2.xpose.msra.mxu0 0.0
    %221 = vmatprep.subr.mxu0 0.0
    %222 = vmatpush2.xpose.msra.mxu0 0.0
    %223 = vmatprep.subr.mxu0 0.0
    %224 = vmatpush2.xpose.msra.mxu0 0.0
    %225 = vmatprep.subr.mxu0 0.0
    %226 = vmatpush2.xpose.msra.mxu0 0.0
    %227 = vmatprep.subr.mxu0 0.0
    %228 = vmatpush2.xpose.msra.mxu0 0.0
    %229 = vmatprep.subr.mxu0 0.0
    %230 = vmatpush2.xpose.msra.mxu0 0.0
    %231 = vmatprep.subr.mxu0 0.0
    %232 = vmatpush2.xpose.msra.mxu0 0.0
    %233 = vmatprep.subr.mxu0 0.0
    %234 = vmatpush2.xpose.msra.mxu0 0.0
    %235 = vmatprep.subr.mxu0 0.0
    %236 = vmatpush2.xpose.msra.mxu0 0.0
    %237 = vmatprep.subr.mxu0 0.0
    %238 = vmatpush2.xpose.msra.mxu0 0.0
    %239 = vmatprep.subr.mxu0 0.0
    %240 = vmatpush2.xpose.msra.mxu0 0.0
    %241 = vmatprep.subr.mxu0 0.0
    %242 = vmatpush2.xpose.msra.mxu0 0.0
    %243 = vmatprep.subr.mxu0 0.0
    %244 = vmatpush2.xpose.msra.mxu0 0.0
    %245 = vmatprep.subr.mxu0 0.0
    %246 = vmatpush2.xpose.msra.mxu0 0.0
    %247 = vmatprep.mubr.f32.mxu0 0.0
    %248 = vmatmul.mubr.f32.gmra.mxu0 %v179
    %v249 = vpop.f32.mrf.mxu0
    %v250 = vadd.f32 0.0, %v249
    %v251 = vpop.f32.mrf.mxu0
    %252 = vdwg.mxu0
    %254 = vrot.lane.b32.xlu0 %v168, 120
    %v255 = vpop.permute.xlu0 %254
    %v256 = vsel %vm178, %v168, 0
    %v258 = vsel %vm178, %v255, 0
    %260 = vmatprep.subr.mxu0 0.0
    %261 = vmatpush1.xpose.msra.mxu0 0.0
    %262 = vmatprep.subr.mxu0 0.0
    %263 = vmatpush1.xpose.msra.mxu0 0.0
    %264 = vmatprep.subr.mxu0 0.0
    %265 = vmatpush1.xpose.msra.mxu0 0.0
    %266 = vmatprep.subr.mxu0 0.0
    %267 = vmatpush1.xpose.msra.mxu0 0.0
    %268 = vmatprep.subr.mxu0 0.0
    %269 = vmatpush1.xpose.msra.mxu0 0.0
    %270 = vmatprep.subr.mxu0 0.0
    %271 = vmatpush1.xpose.msra.mxu0 0.0
    %272 = vmatprep.subr.mxu0 0.0
    %273 = vmatpush1.xpose.msra.mxu0 0.0
    %274 = vmatprep.subr.mxu0 0.0
    %275 = vmatpush1.xpose.msra.mxu0 0.0
    %276 = vmatprep.subr.mxu0 0.0
    %277 = vmatpush1.xpose.msra.mxu0 0.0
    %278 = vmatprep.subr.mxu0 0.0
    %279 = vmatpush1.xpose.msra.mxu0 0.0
    %280 = vmatprep.subr.mxu0 0.0
    %281 = vmatpush1.xpose.msra.mxu0 0.0
    %282 = vmatprep.subr.mxu0 0.0
    %283 = vmatpush1.xpose.msra.mxu0 0.0
    %284 = vmatprep.subr.mxu0 0.0
    %285 = vmatpush1.xpose.msra.mxu0 0.0
    %286 = vmatprep.subr.mxu0 0.0
    %287 = vmatpush1.xpose.msra.mxu0 0.0
    %288 = vmatprep.subr.mxu0 0.0
    %289 = vmatpush1.xpose.msra.mxu0 0.0
    %290 = vmatprep.subr.mxu0 0.0
    %291 = vmatpush1.xpose.msra.mxu0 %v258
    %292 = vmatprep.subr.mxu0 0.0
    %293 = vmatpush2.xpose.msra.mxu0 0.0
    %294 = vmatprep.subr.mxu0 0.0
    %295 = vmatpush2.xpose.msra.mxu0 0.0
    %296 = vmatprep.subr.mxu0 0.0
    %297 = vmatpush2.xpose.msra.mxu0 0.0
    %298 = vmatprep.subr.mxu0 0.0
    %299 = vmatpush2.xpose.msra.mxu0 0.0
    %300 = vmatprep.subr.mxu0 0.0
    %301 = vmatpush2.xpose.msra.mxu0 0.0
    %302 = vmatprep.subr.mxu0 0.0
    %303 = vmatpush2.xpose.msra.mxu0 0.0
    %304 = vmatprep.subr.mxu0 0.0
    %305 = vmatpush2.xpose.msra.mxu0 0.0
    %306 = vmatprep.subr.mxu0 0.0
    %307 = vmatpush2.xpose.msra.mxu0 0.0
    %308 = vmatprep.subr.mxu0 0.0
    %309 = vmatpush2.xpose.msra.mxu0 0.0
    %310 = vmatprep.subr.mxu0 0.0
    %311 = vmatpush2.xpose.msra.mxu0 0.0
    %312 = vmatprep.subr.mxu0 0.0
    %313 = vmatpush2.xpose.msra.mxu0 0.0
    %314 = vmatprep.subr.mxu0 0.0
    %315 = vmatpush2.xpose.msra.mxu0 0.0
    %316 = vmatprep.subr.mxu0 0.0
    %317 = vmatpush2.xpose.msra.mxu0 0.0
    %318 = vmatprep.subr.mxu0 0.0
    %319 = vmatpush2.xpose.msra.mxu0 0.0
    %320 = vmatprep.subr.mxu0 0.0
    %321 = vmatpush2.xpose.msra.mxu0 0.0
    %322 = vmatprep.subr.mxu0 0.0
    %323 = vmatpush2.xpose.msra.mxu0 0.0
    %324 = vmatprep.mubr.f32.mxu0 0.0
    %325 = vmatmul.mubr.f32.gmra.mxu0 %v256
    %v326 = vpop.f32.mrf.mxu0
    %v327 = vadd.f32 0.0, %v326
    %v328 = vpop.f32.mrf.mxu0
    %329 = vdwg.mxu0
    %331 = vrot.lane.b32.xlu0 %v169, 120
    %v332 = vpop.permute.xlu0 %331
    %v333 = vsel %vm178, %v169, 0
    %v335 = vsel %vm178, %v332, 0
    %337 = vmatprep.subr.mxu0 0.0
    %338 = vmatpush1.xpose.msra.mxu0 0.0
    %339 = vmatprep.subr.mxu0 0.0
    %340 = vmatpush1.xpose.msra.mxu0 0.0
    %341 = vmatprep.subr.mxu0 0.0
    %342 = vmatpush1.xpose.msra.mxu0 0.0
    %343 = vmatprep.subr.mxu0 0.0
    %344 = vmatpush1.xpose.msra.mxu0 0.0
    %345 = vmatprep.subr.mxu0 0.0
    %346 = vmatpush1.xpose.msra.mxu0 0.0
    %347 = vmatprep.subr.mxu0 0.0
    %348 = vmatpush1.xpose.msra.mxu0 0.0
    %349 = vmatprep.subr.mxu0 0.0
    %350 = vmatpush1.xpose.msra.mxu0 0.0
    %351 = vmatprep.subr.mxu0 0.0
    %352 = vmatpush1.xpose.msra.mxu0 0.0
    %353 = vmatprep.subr.mxu0 0.0
    %354 = vmatpush1.xpose.msra.mxu0 0.0
    %355 = vmatprep.subr.mxu0 0.0
    %356 = vmatpush1.xpose.msra.mxu0 0.0
    %357 = vmatprep.subr.mxu0 0.0
    %358 = vmatpush1.xpose.msra.mxu0 0.0
    %359 = vmatprep.subr.mxu0 0.0
    %360 = vmatpush1.xpose.msra.mxu0 0.0
    %361 = vmatprep.subr.mxu0 0.0
    %362 = vmatpush1.xpose.msra.mxu0 0.0
    %363 = vmatprep.subr.mxu0 0.0
    %364 = vmatpush1.xpose.msra.mxu0 0.0
    %365 = vmatprep.subr.mxu0 0.0
    %366 = vmatpush1.xpose.msra.mxu0 0.0
    %367 = vmatprep.subr.mxu0 0.0
    %368 = vmatpush1.xpose.msra.mxu0 %v335
    %369 = vmatprep.subr.mxu0 0.0
    %370 = vmatpush2.xpose.msra.mxu0 0.0
    %371 = vmatprep.subr.mxu0 0.0
    %372 = vmatpush2.xpose.msra.mxu0 0.0
    %373 = vmatprep.subr.mxu0 0.0
    %374 = vmatpush2.xpose.msra.mxu0 0.0
    %375 = vmatprep.subr.mxu0 0.0
    %376 = vmatpush2.xpose.msra.mxu0 0.0
    %377 = vmatprep.subr.mxu0 0.0
    %378 = vmatpush2.xpose.msra.mxu0 0.0
    %379 = vmatprep.subr.mxu0 0.0
    %380 = vmatpush2.xpose.msra.mxu0 0.0
    %381 = vmatprep.subr.mxu0 0.0
    %382 = vmatpush2.xpose.msra.mxu0 0.0
    %383 = vmatprep.subr.mxu0 0.0
    %384 = vmatpush2.xpose.msra.mxu0 0.0
    %385 = vmatprep.subr.mxu0 0.0
    %386 = vmatpush2.xpose.msra.mxu0 0.0
    %387 = vmatprep.subr.mxu0 0.0
    %388 = vmatpush2.xpose.msra.mxu0 0.0
    %389 = vmatprep.subr.mxu0 0.0
    %390 = vmatpush2.xpose.msra.mxu0 0.0
    %391 = vmatprep.subr.mxu0 0.0
    %392 = vmatpush2.xpose.msra.mxu0 0.0
    %393 = vmatprep.subr.mxu0 0.0
    %394 = vmatpush2.xpose.msra.mxu0 0.0
    %395 = vmatprep.subr.mxu0 0.0
    %396 = vmatpush2.xpose.msra.mxu0 0.0
    %397 = vmatprep.subr.mxu0 0.0
    %398 = vmatpush2.xpose.msra.mxu0 0.0
    %399 = vmatprep.subr.mxu0 0.0
    %400 = vmatpush2.xpose.msra.mxu0 0.0
    %401 = vmatprep.mubr.f32.mxu0 0.0
    %402 = vmatmul.mubr.f32.gmra.mxu0 %v333
    %v403 = vpop.f32.mrf.mxu0
    %v404 = vadd.f32 0.0, %v403
    %v405 = vpop.f32.mrf.mxu0
    %406 = vdwg.mxu0
    %408 = vrot.lane.b32.xlu0 %v170, 120
    %v409 = vpop.permute.xlu0 %408
    %v410 = vsel %vm178, %v170, 0
    %v412 = vsel %vm178, %v409, 0
    %414 = vmatprep.subr.mxu0 0.0
    %415 = vmatpush1.xpose.msra.mxu0 0.0
    %416 = vmatprep.subr.mxu0 0.0
    %417 = vmatpush1.xpose.msra.mxu0 0.0
    %418 = vmatprep.subr.mxu0 0.0
    %419 = vmatpush1.xpose.msra.mxu0 0.0
    %420 = vmatprep.subr.mxu0 0.0
    %421 = vmatpush1.xpose.msra.mxu0 0.0
    %422 = vmatprep.subr.mxu0 0.0
    %423 = vmatpush1.xpose.msra.mxu0 0.0
    %424 = vmatprep.subr.mxu0 0.0
    %425 = vmatpush1.xpose.msra.mxu0 0.0
    %426 = vmatprep.subr.mxu0 0.0
    %427 = vmatpush1.xpose.msra.mxu0 0.0
    %428 = vmatprep.subr.mxu0 0.0
    %429 = vmatpush1.xpose.msra.mxu0 0.0
    %430 = vmatprep.subr.mxu0 0.0
    %431 = vmatpush1.xpose.msra.mxu0 0.0
    %432 = vmatprep.subr.mxu0 0.0
    %433 = vmatpush1.xpose.msra.mxu0 0.0
    %434 = vmatprep.subr.mxu0 0.0
    %435 = vmatpush1.xpose.msra.mxu0 0.0
    %436 = vmatprep.subr.mxu0 0.0
    %437 = vmatpush1.xpose.msra.mxu0 0.0
    %438 = vmatprep.subr.mxu0 0.0
    %439 = vmatpush1.xpose.msra.mxu0 0.0
    %440 = vmatprep.subr.mxu0 0.0
    %441 = vmatpush1.xpose.msra.mxu0 0.0
    %442 = vmatprep.subr.mxu0 0.0
    %443 = vmatpush1.xpose.msra.mxu0 0.0
    %444 = vmatprep.subr.mxu0 0.0
    %445 = vmatpush1.xpose.msra.mxu0 %v412
    %446 = vmatprep.subr.mxu0 0.0
    %447 = vmatpush2.xpose.msra.mxu0 0.0
    %448 = vmatprep.subr.mxu0 0.0
    %449 = vmatpush2.xpose.msra.mxu0 0.0
    %450 = vmatprep.subr.mxu0 0.0
    %451 = vmatpush2.xpose.msra.mxu0 0.0
    %452 = vmatprep.subr.mxu0 0.0
    %453 = vmatpush2.xpose.msra.mxu0 0.0
    %454 = vmatprep.subr.mxu0 0.0
    %455 = vmatpush2.xpose.msra.mxu0 0.0
    %456 = vmatprep.subr.mxu0 0.0
    %457 = vmatpush2.xpose.msra.mxu0 0.0
    %458 = vmatprep.subr.mxu0 0.0
    %459 = vmatpush2.xpose.msra.mxu0 0.0
    %460 = vmatprep.subr.mxu0 0.0
    %461 = vmatpush2.xpose.msra.mxu0 0.0
    %462 = vmatprep.subr.mxu0 0.0
    %463 = vmatpush2.xpose.msra.mxu0 0.0
    %464 = vmatprep.subr.mxu0 0.0
    %465 = vmatpush2.xpose.msra.mxu0 0.0
    %466 = vmatprep.subr.mxu0 0.0
    %467 = vmatpush2.xpose.msra.mxu0 0.0
    %468 = vmatprep.subr.mxu0 0.0
    %469 = vmatpush2.xpose.msra.mxu0 0.0
    %470 = vmatprep.subr.mxu0 0.0
    %471 = vmatpush2.xpose.msra.mxu0 0.0
    %472 = vmatprep.subr.mxu0 0.0
    %473 = vmatpush2.xpose.msra.mxu0 0.0
    %474 = vmatprep.subr.mxu0 0.0
    %475 = vmatpush2.xpose.msra.mxu0 0.0
    %476 = vmatprep.subr.mxu0 0.0
    %477 = vmatpush2.xpose.msra.mxu0 0.0
    %478 = vmatprep.mubr.f32.mxu0 0.0
    %479 = vmatmul.mubr.f32.gmra.mxu0 %v410
    %v480 = vpop.f32.mrf.mxu0
    %v481 = vadd.f32 0.0, %v480
    %v482 = vpop.f32.mrf.mxu0
    %483 = vdwg.mxu0
    %485 = vrot.lane.b32.xlu0 %v171, 120
    %v486 = vpop.permute.xlu0 %485
    %v487 = vsel %vm178, %v171, 0
    %v489 = vsel %vm178, %v486, 0
    %491 = vmatprep.subr.mxu0 0.0
    %492 = vmatpush1.xpose.msra.mxu0 0.0
    %493 = vmatprep.subr.mxu0 0.0
    %494 = vmatpush1.xpose.msra.mxu0 0.0
    %495 = vmatprep.subr.mxu0 0.0
    %496 = vmatpush1.xpose.msra.mxu0 0.0
    %497 = vmatprep.subr.mxu0 0.0
    %498 = vmatpush1.xpose.msra.mxu0 0.0
    %499 = vmatprep.subr.mxu0 0.0
    %500 = vmatpush1.xpose.msra.mxu0 0.0
    %501 = vmatprep.subr.mxu0 0.0
    %502 = vmatpush1.xpose.msra.mxu0 0.0
    %503 = vmatprep.subr.mxu0 0.0
    %504 = vmatpush1.xpose.msra.mxu0 0.0
    %505 = vmatprep.subr.mxu0 0.0
    %506 = vmatpush1.xpose.msra.mxu0 0.0
    %507 = vmatprep.subr.mxu0 0.0
    %508 = vmatpush1.xpose.msra.mxu0 0.0
    %509 = vmatprep.subr.mxu0 0.0
    %510 = vmatpush1.xpose.msra.mxu0 0.0
    %511 = vmatprep.subr.mxu0 0.0
    %512 = vmatpush1.xpose.msra.mxu0 0.0
    %513 = vmatprep.subr.mxu0 0.0
    %514 = vmatpush1.xpose.msra.mxu0 0.0
    %515 = vmatprep.subr.mxu0 0.0
    %516 = vmatpush1.xpose.msra.mxu0 0.0
    %517 = vmatprep.subr.mxu0 0.0
    %518 = vmatpush1.xpose.msra.mxu0 0.0
    %519 = vmatprep.subr.mxu0 0.0
    %520 = vmatpush1.xpose.msra.mxu0 0.0
    %521 = vmatprep.subr.mxu0 0.0
    %522 = vmatpush1.xpose.msra.mxu0 %v489
    %523 = vmatprep.subr.mxu0 0.0
    %524 = vmatpush2.xpose.msra.mxu0 0.0
    %525 = vmatprep.subr.mxu0 0.0
    %526 = vmatpush2.xpose.msra.mxu0 0.0
    %527 = vmatprep.subr.mxu0 0.0
    %528 = vmatpush2.xpose.msra.mxu0 0.0
    %529 = vmatprep.subr.mxu0 0.0
    %530 = vmatpush2.xpose.msra.mxu0 0.0
    %531 = vmatprep.subr.mxu0 0.0
    %532 = vmatpush2.xpose.msra.mxu0 0.0
    %533 = vmatprep.subr.mxu0 0.0
    %534 = vmatpush2.xpose.msra.mxu0 0.0
    %535 = vmatprep.subr.mxu0 0.0
    %536 = vmatpush2.xpose.msra.mxu0 0.0
    %537 = vmatprep.subr.mxu0 0.0
    %538 = vmatpush2.xpose.msra.mxu0 0.0
    %539 = vmatprep.subr.mxu0 0.0
    %540 = vmatpush2.xpose.msra.mxu0 0.0
    %541 = vmatprep.subr.mxu0 0.0
    %542 = vmatpush2.xpose.msra.mxu0 0.0
    %543 = vmatprep.subr.mxu0 0.0
    %544 = vmatpush2.xpose.msra.mxu0 0.0
    %545 = vmatprep.subr.mxu0 0.0
    %546 = vmatpush2.xpose.msra.mxu0 0.0
    %547 = vmatprep.subr.mxu0 0.0
    %548 = vmatpush2.xpose.msra.mxu0 0.0
    %549 = vmatprep.subr.mxu0 0.0
    %550 = vmatpush2.xpose.msra.mxu0 0.0
    %551 = vmatprep.subr.mxu0 0.0
    %552 = vmatpush2.xpose.msra.mxu0 0.0
    %553 = vmatprep.subr.mxu0 0.0
    %554 = vmatpush2.xpose.msra.mxu0 0.0
    %555 = vmatprep.mubr.f32.mxu0 0.0
    %556 = vmatmul.mubr.f32.gmra.mxu0 %v487
    %v557 = vpop.f32.mrf.mxu0
    %v558 = vadd.f32 0.0, %v557
    %v559 = vpop.f32.mrf.mxu0
    %560 = vdwg.mxu0
    %562 = vrot.lane.b32.xlu0 %v172, 120
    %v563 = vpop.permute.xlu0 %562
    %v564 = vsel %vm178, %v172, 0
    %v566 = vsel %vm178, %v563, 0
    %568 = vmatprep.subr.mxu0 0.0
    %569 = vmatpush1.xpose.msra.mxu0 0.0
    %570 = vmatprep.subr.mxu0 0.0
    %571 = vmatpush1.xpose.msra.mxu0 0.0
    %572 = vmatprep.subr.mxu0 0.0
    %573 = vmatpush1.xpose.msra.mxu0 0.0
    %574 = vmatprep.subr.mxu0 0.0
    %575 = vmatpush1.xpose.msra.mxu0 0.0
    %576 = vmatprep.subr.mxu0 0.0
    %577 = vmatpush1.xpose.msra.mxu0 0.0
    %578 = vmatprep.subr.mxu0 0.0
    %579 = vmatpush1.xpose.msra.mxu0 0.0
    %580 = vmatprep.subr.mxu0 0.0
    %581 = vmatpush1.xpose.msra.mxu0 0.0
    %582 = vmatprep.subr.mxu0 0.0
    %583 = vmatpush1.xpose.msra.mxu0 0.0
    %584 = vmatprep.subr.mxu0 0.0
    %585 = vmatpush1.xpose.msra.mxu0 0.0
    %586 = vmatprep.subr.mxu0 0.0
    %587 = vmatpush1.xpose.msra.mxu0 0.0
    %588 = vmatprep.subr.mxu0 0.0
    %589 = vmatpush1.xpose.msra.mxu0 0.0
    %590 = vmatprep.subr.mxu0 0.0
    %591 = vmatpush1.xpose.msra.mxu0 0.0
    %592 = vmatprep.subr.mxu0 0.0
    %593 = vmatpush1.xpose.msra.mxu0 0.0
    %594 = vmatprep.subr.mxu0 0.0
    %595 = vmatpush1.xpose.msra.mxu0 0.0
    %596 = vmatprep.subr.mxu0 0.0
    %597 = vmatpush1.xpose.msra.mxu0 0.0
    %598 = vmatprep.subr.mxu0 0.0
    %599 = vmatpush1.xpose.msra.mxu0 %v566
    %600 = vmatprep.subr.mxu0 0.0
    %601 = vmatpush2.xpose.msra.mxu0 0.0
    %602 = vmatprep.subr.mxu0 0.0
    %603 = vmatpush2.xpose.msra.mxu0 0.0
    %604 = vmatprep.subr.mxu0 0.0
    %605 = vmatpush2.xpose.msra.mxu0 0.0
    %606 = vmatprep.subr.mxu0 0.0
    %607 = vmatpush2.xpose.msra.mxu0 0.0
    %608 = vmatprep.subr.mxu0 0.0
    %609 = vmatpush2.xpose.msra.mxu0 0.0
    %610 = vmatprep.subr.mxu0 0.0
    %611 = vmatpush2.xpose.msra.mxu0 0.0
    %612 = vmatprep.subr.mxu0 0.0
    %613 = vmatpush2.xpose.msra.mxu0 0.0
    %614 = vmatprep.subr.mxu0 0.0
    %615 = vmatpush2.xpose.msra.mxu0 0.0
    %616 = vmatprep.subr.mxu0 0.0
    %617 = vmatpush2.xpose.msra.mxu0 0.0
    %618 = vmatprep.subr.mxu0 0.0
    %619 = vmatpush2.xpose.msra.mxu0 0.0
    %620 = vmatprep.subr.mxu0 0.0
    %621 = vmatpush2.xpose.msra.mxu0 0.0
    %622 = vmatprep.subr.mxu0 0.0
    %623 = vmatpush2.xpose.msra.mxu0 0.0
    %624 = vmatprep.subr.mxu0 0.0
    %625 = vmatpush2.xpose.msra.mxu0 0.0
    %626 = vmatprep.subr.mxu0 0.0
    %627 = vmatpush2.xpose.msra.mxu0 0.0
    %628 = vmatprep.subr.mxu0 0.0
    %629 = vmatpush2.xpose.msra.mxu0 0.0
    %630 = vmatprep.subr.mxu0 0.0
    %631 = vmatpush2.xpose.msra.mxu0 0.0
    %632 = vmatprep.mubr.f32.mxu0 0.0
    %633 = vmatmul.mubr.f32.gmra.mxu0 %v564
    %v634 = vpop.f32.mrf.mxu0
    %v635 = vadd.f32 0.0, %v634
    %v636 = vpop.f32.mrf.mxu0
    %637 = vdwg.mxu0
    %639 = vrot.lane.b32.xlu0 %v173, 120
    %v640 = vpop.permute.xlu0 %639
    %v641 = vsel %vm178, %v173, 0
    %v643 = vsel %vm178, %v640, 0
    %645 = vmatprep.subr.mxu0 0.0
    %646 = vmatpush1.xpose.msra.mxu0 0.0
    %647 = vmatprep.subr.mxu0 0.0
    %648 = vmatpush1.xpose.msra.mxu0 0.0
    %649 = vmatprep.subr.mxu0 0.0
    %650 = vmatpush1.xpose.msra.mxu0 0.0
    %651 = vmatprep.subr.mxu0 0.0
    %652 = vmatpush1.xpose.msra.mxu0 0.0
    %653 = vmatprep.subr.mxu0 0.0
    %654 = vmatpush1.xpose.msra.mxu0 0.0
    %655 = vmatprep.subr.mxu0 0.0
    %656 = vmatpush1.xpose.msra.mxu0 0.0
    %657 = vmatprep.subr.mxu0 0.0
    %658 = vmatpush1.xpose.msra.mxu0 0.0
    %659 = vmatprep.subr.mxu0 0.0
    %660 = vmatpush1.xpose.msra.mxu0 0.0
    %661 = vmatprep.subr.mxu0 0.0
    %662 = vmatpush1.xpose.msra.mxu0 0.0
    %663 = vmatprep.subr.mxu0 0.0
    %664 = vmatpush1.xpose.msra.mxu0 0.0
    %665 = vmatprep.subr.mxu0 0.0
    %666 = vmatpush1.xpose.msra.mxu0 0.0
    %667 = vmatprep.subr.mxu0 0.0
    %668 = vmatpush1.xpose.msra.mxu0 0.0
    %669 = vmatprep.subr.mxu0 0.0
    %670 = vmatpush1.xpose.msra.mxu0 0.0
    %671 = vmatprep.subr.mxu0 0.0
    %672 = vmatpush1.xpose.msra.mxu0 0.0
    %673 = vmatprep.subr.mxu0 0.0
    %674 = vmatpush1.xpose.msra.mxu0 0.0
    %675 = vmatprep.subr.mxu0 0.0
    %676 = vmatpush1.xpose.msra.mxu0 %v643
    %677 = vmatprep.subr.mxu0 0.0
    %678 = vmatpush2.xpose.msra.mxu0 0.0
    %679 = vmatprep.subr.mxu0 0.0
    %680 = vmatpush2.xpose.msra.mxu0 0.0
    %681 = vmatprep.subr.mxu0 0.0
    %682 = vmatpush2.xpose.msra.mxu0 0.0
    %683 = vmatprep.subr.mxu0 0.0
    %684 = vmatpush2.xpose.msra.mxu0 0.0
    %685 = vmatprep.subr.mxu0 0.0
    %686 = vmatpush2.xpose.msra.mxu0 0.0
    %687 = vmatprep.subr.mxu0 0.0
    %688 = vmatpush2.xpose.msra.mxu0 0.0
    %689 = vmatprep.subr.mxu0 0.0
    %690 = vmatpush2.xpose.msra.mxu0 0.0
    %691 = vmatprep.subr.mxu0 0.0
    %692 = vmatpush2.xpose.msra.mxu0 0.0
    %693 = vmatprep.subr.mxu0 0.0
    %694 = vmatpush2.xpose.msra.mxu0 0.0
    %695 = vmatprep.subr.mxu0 0.0
    %696 = vmatpush2.xpose.msra.mxu0 0.0
    %697 = vmatprep.subr.mxu0 0.0
    %698 = vmatpush2.xpose.msra.mxu0 0.0
    %699 = vmatprep.subr.mxu0 0.0
    %700 = vmatpush2.xpose.msra.mxu0 0.0
    %701 = vmatprep.subr.mxu0 0.0
    %702 = vmatpush2.xpose.msra.mxu0 0.0
    %703 = vmatprep.subr.mxu0 0.0
    %704 = vmatpush2.xpose.msra.mxu0 0.0
    %705 = vmatprep.subr.mxu0 0.0
    %706 = vmatpush2.xpose.msra.mxu0 0.0
    %707 = vmatprep.subr.mxu0 0.0
    %708 = vmatpush2.xpose.msra.mxu0 0.0
    %709 = vmatprep.mubr.f32.mxu0 0.0
    %710 = vmatmul.mubr.f32.gmra.mxu0 %v641
    %v711 = vpop.f32.mrf.mxu0
    %v712 = vadd.f32 0.0, %v711
    %v713 = vpop.f32.mrf.mxu0
    %714 = vdwg.mxu0
    %716 = vrot.lane.b32.xlu0 %v174, 120
    %v717 = vpop.permute.xlu0 %716
    %v718 = vsel %vm178, %v174, 0
    %v720 = vsel %vm178, %v717, 0
    %722 = vmatprep.subr.mxu0 0.0
    %723 = vmatpush1.xpose.msra.mxu0 0.0
    %724 = vmatprep.subr.mxu0 0.0
    %725 = vmatpush1.xpose.msra.mxu0 0.0
    %726 = vmatprep.subr.mxu0 0.0
    %727 = vmatpush1.xpose.msra.mxu0 0.0
    %728 = vmatprep.subr.mxu0 0.0
    %729 = vmatpush1.xpose.msra.mxu0 0.0
    %730 = vmatprep.subr.mxu0 0.0
    %731 = vmatpush1.xpose.msra.mxu0 0.0
    %732 = vmatprep.subr.mxu0 0.0
    %733 = vmatpush1.xpose.msra.mxu0 0.0
    %734 = vmatprep.subr.mxu0 0.0
    %735 = vmatpush1.xpose.msra.mxu0 0.0
    %736 = vmatprep.subr.mxu0 0.0
    %737 = vmatpush1.xpose.msra.mxu0 0.0
    %738 = vmatprep.subr.mxu0 0.0
    %739 = vmatpush1.xpose.msra.mxu0 0.0
    %740 = vmatprep.subr.mxu0 0.0
    %741 = vmatpush1.xpose.msra.mxu0 0.0
    %742 = vmatprep.subr.mxu0 0.0
    %743 = vmatpush1.xpose.msra.mxu0 0.0
    %744 = vmatprep.subr.mxu0 0.0
    %745 = vmatpush1.xpose.msra.mxu0 0.0
    %746 = vmatprep.subr.mxu0 0.0
    %747 = vmatpush1.xpose.msra.mxu0 0.0
    %748 = vmatprep.subr.mxu0 0.0
    %749 = vmatpush1.xpose.msra.mxu0 0.0
    %750 = vmatprep.subr.mxu0 0.0
    %751 = vmatpush1.xpose.msra.mxu0 0.0
    %752 = vmatprep.subr.mxu0 0.0
    %753 = vmatpush1.xpose.msra.mxu0 %v720
    %754 = vmatprep.subr.mxu0 0.0
    %755 = vmatpush2.xpose.msra.mxu0 0.0
    %756 = vmatprep.subr.mxu0 0.0
    %757 = vmatpush2.xpose.msra.mxu0 0.0
    %758 = vmatprep.subr.mxu0 0.0
    %759 = vmatpush2.xpose.msra.mxu0 0.0
    %760 = vmatprep.subr.mxu0 0.0
    %761 = vmatpush2.xpose.msra.mxu0 0.0
    %762 = vmatprep.subr.mxu0 0.0
    %763 = vmatpush2.xpose.msra.mxu0 0.0
    %764 = vmatprep.subr.mxu0 0.0
    %765 = vmatpush2.xpose.msra.mxu0 0.0
    %766 = vmatprep.subr.mxu0 0.0
    %767 = vmatpush2.xpose.msra.mxu0 0.0
    %768 = vmatprep.subr.mxu0 0.0
    %769 = vmatpush2.xpose.msra.mxu0 0.0
    %770 = vmatprep.subr.mxu0 0.0
    %771 = vmatpush2.xpose.msra.mxu0 0.0
    %772 = vmatprep.subr.mxu0 0.0
    %773 = vmatpush2.xpose.msra.mxu0 0.0
    %774 = vmatprep.subr.mxu0 0.0
    %775 = vmatpush2.xpose.msra.mxu0 0.0
    %776 = vmatprep.subr.mxu0 0.0
    %777 = vmatpush2.xpose.msra.mxu0 0.0
    %778 = vmatprep.subr.mxu0 0.0
    %779 = vmatpush2.xpose.msra.mxu0 0.0
    %780 = vmatprep.subr.mxu0 0.0
    %781 = vmatpush2.xpose.msra.mxu0 0.0
    %782 = vmatprep.subr.mxu0 0.0
    %783 = vmatpush2.xpose.msra.mxu0 0.0
    %784 = vmatprep.subr.mxu0 0.0
    %785 = vmatpush2.xpose.msra.mxu0 0.0
    %786 = vmatprep.mubr.f32.mxu0 0.0
    %787 = vmatmul.mubr.f32.gmra.mxu0 %v718
    %v788 = vpop.f32.mrf.mxu0
    %v789 = vadd.f32 0.0, %v788
    %v790 = vpop.f32.mrf.mxu0
    %791 = vdwg.mxu0
    %v792 = vmul.f32 %v250, 0.35355338
    %v793 = vmul.f32 %v327, 0.35355338
    %v794 = vmul.f32 %v404, 0.35355338
    %v795 = vmul.f32 %v481, 0.35355338
    %v796 = vmul.f32 %v558, 0.35355338
    %v797 = vmul.f32 %v635, 0.35355338
    %v798 = vmul.f32 %v712, 0.35355338
    %v799 = vmul.f32 %v789, 0.35355338
    %v800 = vsel %vm178, %v792, -inf
    %801 = vmax.xlane.f32.xlu0 %v800
    %v802 = vpop.xlane.xlu0 %801
    %v803 = vsel %vm178, %v793, -inf
    %804 = vmax.xlane.f32.xlu0 %v803
    %v805 = vpop.xlane.xlu0 %804
    %v806 = vsel %vm178, %v794, -inf
    %807 = vmax.xlane.f32.xlu0 %v806
    %v808 = vpop.xlane.xlu0 %807
    %v809 = vsel %vm178, %v795, -inf
    %810 = vmax.xlane.f32.xlu0 %v809
    %v811 = vpop.xlane.xlu0 %810
    %v812 = vsel %vm178, %v796, -inf
    %813 = vmax.xlane.f32.xlu0 %v812
    %v814 = vpop.xlane.xlu0 %813
    %v815 = vsel %vm178, %v797, -inf
    %816 = vmax.xlane.f32.xlu0 %v815
    %v817 = vpop.xlane.xlu0 %816
    %v818 = vsel %vm178, %v798, -inf
    %819 = vmax.xlane.f32.xlu0 %v818
    %v820 = vpop.xlane.xlu0 %819
    %v821 = vsel %vm178, %v799, -inf
    %822 = vmax.xlane.f32.xlu0 %v821
    %v823 = vpop.xlane.xlu0 %822
    %v824 = vsub.f32 %v792, %v802
    %v825 = vsub.f32 %v793, %v805
    %v826 = vsub.f32 %v794, %v808
    %v827 = vsub.f32 %v795, %v811
    %v828 = vsub.f32 %v796, %v814
    %v829 = vsub.f32 %v797, %v817
    %v830 = vsub.f32 %v798, %v820
    %v831 = vsub.f32 %v799, %v823
    %v832 = vmul.f32 %v824, 1.442695
    %v833 = vpow.pop %v832
    %v834 = vmul.f32 %v825, 1.442695
    %v835 = vpow.pop %v834
    %v836 = vmul.f32 %v826, 1.442695
    %v837 = vpow.pop %v836
    %v838 = vmul.f32 %v827, 1.442695
    %v839 = vpow.pop %v838
    %v840 = vmul.f32 %v828, 1.442695
    %v841 = vpow.pop %v840
    %v842 = vmul.f32 %v829, 1.442695
    %v843 = vpow.pop %v842
    %v844 = vmul.f32 %v830, 1.442695
    %v845 = vpow.pop %v844
    %v846 = vmul.f32 %v831, 1.442695
    %v847 = vpow.pop %v846
    %v848 = vsel %vm178, %v833, 0.0
    %849 = vadd.xlane.f32.xlu0 %v848
    %v850 = vpop.xlane.xlu0 %849
    %v851 = vsel %vm178, %v835, 0.0
    %852 = vadd.xlane.f32.xlu0 %v851
    %v853 = vpop.xlane.xlu0 %852
    %v854 = vsel %vm178, %v837, 0.0
    %855 = vadd.xlane.f32.xlu0 %v854
    %v856 = vpop.xlane.xlu0 %855
    %v857 = vsel %vm178, %v839, 0.0
    %858 = vadd.xlane.f32.xlu0 %v857
    %v859 = vpop.xlane.xlu0 %858
    %v860 = vsel %vm178, %v841, 0.0
    %861 = vadd.xlane.f32.xlu0 %v860
    %v862 = vpop.xlane.xlu0 %861
    %v863 = vsel %vm178, %v843, 0.0
    %864 = vadd.xlane.f32.xlu0 %v863
    %v865 = vpop.xlane.xlu0 %864
    %v866 = vsel %vm178, %v845, 0.0
    %867 = vadd.xlane.f32.xlu0 %v866
    %v868 = vpop.xlane.xlu0 %867
    %v869 = vsel %vm178, %v847, 0.0
    %870 = vadd.xlane.f32.xlu0 %v869
    %v871 = vpop.xlane.xlu0 %870
    %v872 = vrcp.pop %v850
    %v873 = vrcp.pop %v853
    %v874 = vrcp.pop %v856
    %v875 = vrcp.pop %v859
    %v876 = vrcp.pop %v862
    %v877 = vrcp.pop %v865
    %v878 = vrcp.pop %v868
    %v879 = vrcp.pop %v871
    %v880 = vmul.f32 %v833, %v872
    %v881 = vmul.f32 %v835, %v873
    %v882 = vmul.f32 %v837, %v874
    %v883 = vmul.f32 %v839, %v875
    %v884 = vmul.f32 %v841, %v876
    %v885 = vmul.f32 %v843, %v877
    %v886 = vmul.f32 %v845, %v878
    %v887 = vmul.f32 %v847, %v879
    %888 = vrot.lane.b32.xlu0 %v167, 112
    %v889 = vpop.permute.xlu0 %888
    %v892 = vsel %vm178, %v880, 0
    %894 = vmatprep.subr.mxu0 0.0
    %895 = vmatpush1.msra.mxu0 0.0
    %896 = vmatprep.subr.mxu0 0.0
    %897 = vmatpush1.msra.mxu0 0.0
    %898 = vmatprep.subr.mxu0 0.0
    %899 = vmatpush1.msra.mxu0 0.0
    %900 = vmatprep.subr.mxu0 0.0
    %901 = vmatpush1.msra.mxu0 0.0
    %902 = vmatprep.subr.mxu0 0.0
    %903 = vmatpush1.msra.mxu0 0.0
    %904 = vmatprep.subr.mxu0 0.0
    %905 = vmatpush1.msra.mxu0 0.0
    %906 = vmatprep.subr.mxu0 0.0
    %907 = vmatpush1.msra.mxu0 0.0
    %908 = vmatprep.subr.mxu0 0.0
    %909 = vmatpush1.msra.mxu0 0.0
    %910 = vmatprep.subr.mxu0 0.0
    %911 = vmatpush1.msra.mxu0 0.0
    %912 = vmatprep.subr.mxu0 0.0
    %913 = vmatpush1.msra.mxu0 0.0
    %914 = vmatprep.subr.mxu0 0.0
    %915 = vmatpush1.msra.mxu0 0.0
    %916 = vmatprep.subr.mxu0 0.0
    %917 = vmatpush1.msra.mxu0 0.0
    %918 = vmatprep.subr.mxu0 0.0
    %919 = vmatpush1.msra.mxu0 0.0
    %920 = vmatprep.subr.mxu0 0.0
    %921 = vmatpush1.msra.mxu0 0.0
    %922 = vmatprep.subr.mxu0 0.0
    %923 = vmatpush1.msra.mxu0 0.0
    %924 = vmatprep.subr.mxu0 0.0
    %925 = vmatpush1.msra.mxu0 %v889
    %926 = vmatprep.subr.mxu0 0.0
    %927 = vmatpush2.msra.mxu0 0.0
    %928 = vmatprep.subr.mxu0 0.0
    %929 = vmatpush2.msra.mxu0 0.0
    %930 = vmatprep.subr.mxu0 0.0
    %931 = vmatpush2.msra.mxu0 0.0
    %932 = vmatprep.subr.mxu0 0.0
    %933 = vmatpush2.msra.mxu0 0.0
    %934 = vmatprep.subr.mxu0 0.0
    %935 = vmatpush2.msra.mxu0 0.0
    %936 = vmatprep.subr.mxu0 0.0
    %937 = vmatpush2.msra.mxu0 0.0
    %938 = vmatprep.subr.mxu0 0.0
    %939 = vmatpush2.msra.mxu0 0.0
    %940 = vmatprep.subr.mxu0 0.0
    %941 = vmatpush2.msra.mxu0 0.0
    %942 = vmatprep.subr.mxu0 0.0
    %943 = vmatpush2.msra.mxu0 0.0
    %944 = vmatprep.subr.mxu0 0.0
    %945 = vmatpush2.msra.mxu0 0.0
    %946 = vmatprep.subr.mxu0 0.0
    %947 = vmatpush2.msra.mxu0 0.0
    %948 = vmatprep.subr.mxu0 0.0
    %949 = vmatpush2.msra.mxu0 0.0
    %950 = vmatprep.subr.mxu0 0.0
    %951 = vmatpush2.msra.mxu0 0.0
    %952 = vmatprep.subr.mxu0 0.0
    %953 = vmatpush2.msra.mxu0 0.0
    %954 = vmatprep.subr.mxu0 0.0
    %955 = vmatpush2.msra.mxu0 0.0
    %956 = vmatprep.subr.mxu0 0.0
    %957 = vmatpush2.msra.mxu0 0.0
    %958 = vmatprep.mubr.f32.mxu0 0.0
    %959 = vmatmul.mubr.f32.gmra.mxu0 %v892
    %v960 = vpop.f32.mrf.mxu0
    %v961 = vadd.f32 0.0, %v960
    %v962 = vpop.f32.mrf.mxu0
    %963 = vdwg.mxu0
    %964 = vrot.lane.b32.xlu0 %v168, 112
    %v965 = vpop.permute.xlu0 %964
    %v968 = vsel %vm178, %v881, 0
    %970 = vmatprep.subr.mxu0 0.0
    %971 = vmatpush1.msra.mxu0 0.0
    %972 = vmatprep.subr.mxu0 0.0
    %973 = vmatpush1.msra.mxu0 0.0
    %974 = vmatprep.subr.mxu0 0.0
    %975 = vmatpush1.msra.mxu0 0.0
    %976 = vmatprep.subr.mxu0 0.0
    %977 = vmatpush1.msra.mxu0 0.0
    %978 = vmatprep.subr.mxu0 0.0
    %979 = vmatpush1.msra.mxu0 0.0
    %980 = vmatprep.subr.mxu0 0.0
    %981 = vmatpush1.msra.mxu0 0.0
    %982 = vmatprep.subr.mxu0 0.0
    %983 = vmatpush1.msra.mxu0 0.0
    %984 = vmatprep.subr.mxu0 0.0
    %985 = vmatpush1.msra.mxu0 0.0
    %986 = vmatprep.subr.mxu0 0.0
    %987 = vmatpush1.msra.mxu0 0.0
    %988 = vmatprep.subr.mxu0 0.0
    %989 = vmatpush1.msra.mxu0 0.0
    %990 = vmatprep.subr.mxu0 0.0
    %991 = vmatpush1.msra.mxu0 0.0
    %992 = vmatprep.subr.mxu0 0.0
    %993 = vmatpush1.msra.mxu0 0.0
    %994 = vmatprep.subr.mxu0 0.0
    %995 = vmatpush1.msra.mxu0 0.0
    %996 = vmatprep.subr.mxu0 0.0
    %997 = vmatpush1.msra.mxu0 0.0
    %998 = vmatprep.subr.mxu0 0.0
    %999 = vmatpush1.msra.mxu0 0.0
    %1000 = vmatprep.subr.mxu0 0.0
    %1001 = vmatpush1.msra.mxu0 %v965
    %1002 = vmatprep.subr.mxu0 0.0
    %1003 = vmatpush2.msra.mxu0 0.0
    %1004 = vmatprep.subr.mxu0 0.0
    %1005 = vmatpush2.msra.mxu0 0.0
    %1006 = vmatprep.subr.mxu0 0.0
    %1007 = vmatpush2.msra.mxu0 0.0
    %1008 = vmatprep.subr.mxu0 0.0
    %1009 = vmatpush2.msra.mxu0 0.0
    %1010 = vmatprep.subr.mxu0 0.0
    %1011 = vmatpush2.msra.mxu0 0.0
    %1012 = vmatprep.subr.mxu0 0.0
    %1013 = vmatpush2.msra.mxu0 0.0
    %1014 = vmatprep.subr.mxu0 0.0
    %1015 = vmatpush2.msra.mxu0 0.0
    %1016 = vmatprep.subr.mxu0 0.0
    %1017 = vmatpush2.msra.mxu0 0.0
    %1018 = vmatprep.subr.mxu0 0.0
    %1019 = vmatpush2.msra.mxu0 0.0
    %1020 = vmatprep.subr.mxu0 0.0
    %1021 = vmatpush2.msra.mxu0 0.0
    %1022 = vmatprep.subr.mxu0 0.0
    %1023 = vmatpush2.msra.mxu0 0.0
    %1024 = vmatprep.subr.mxu0 0.0
    %1025 = vmatpush2.msra.mxu0 0.0
    %1026 = vmatprep.subr.mxu0 0.0
    %1027 = vmatpush2.msra.mxu0 0.0
    %1028 = vmatprep.subr.mxu0 0.0
    %1029 = vmatpush2.msra.mxu0 0.0
    %1030 = vmatprep.subr.mxu0 0.0
    %1031 = vmatpush2.msra.mxu0 0.0
    %1032 = vmatprep.subr.mxu0 0.0
    %1033 = vmatpush2.msra.mxu0 0.0
    %1034 = vmatprep.mubr.f32.mxu0 0.0
    %1035 = vmatmul.mubr.f32.gmra.mxu0 %v968
    %v1036 = vpop.f32.mrf.mxu0
    %v1037 = vadd.f32 0.0, %v1036
    %v1038 = vpop.f32.mrf.mxu0
    %1039 = vdwg.mxu0
    %1040 = vrot.lane.b32.xlu0 %v169, 112
    %v1041 = vpop.permute.xlu0 %1040
    %v1044 = vsel %vm178, %v882, 0
    %1046 = vmatprep.subr.mxu0 0.0
    %1047 = vmatpush1.msra.mxu0 0.0
    %1048 = vmatprep.subr.mxu0 0.0
    %1049 = vmatpush1.msra.mxu0 0.0
    %1050 = vmatprep.subr.mxu0 0.0
    %1051 = vmatpush1.msra.mxu0 0.0
    %1052 = vmatprep.subr.mxu0 0.0
    %1053 = vmatpush1.msra.mxu0 0.0
    %1054 = vmatprep.subr.mxu0 0.0
    %1055 = vmatpush1.msra.mxu0 0.0
    %1056 = vmatprep.subr.mxu0 0.0
    %1057 = vmatpush1.msra.mxu0 0.0
    %1058 = vmatprep.subr.mxu0 0.0
    %1059 = vmatpush1.msra.mxu0 0.0
    %1060 = vmatprep.subr.mxu0 0.0
    %1061 = vmatpush1.msra.mxu0 0.0
    %1062 = vmatprep.subr.mxu0 0.0
    %1063 = vmatpush1.msra.mxu0 0.0
    %1064 = vmatprep.subr.mxu0 0.0
    %1065 = vmatpush1.msra.mxu0 0.0
    %1066 = vmatprep.subr.mxu0 0.0
    %1067 = vmatpush1.msra.mxu0 0.0
    %1068 = vmatprep.subr.mxu0 0.0
    %1069 = vmatpush1.msra.mxu0 0.0
    %1070 = vmatprep.subr.mxu0 0.0
    %1071 = vmatpush1.msra.mxu0 0.0
    %1072 = vmatprep.subr.mxu0 0.0
    %1073 = vmatpush1.msra.mxu0 0.0
    %1074 = vmatprep.subr.mxu0 0.0
    %1075 = vmatpush1.msra.mxu0 0.0
    %1076 = vmatprep.subr.mxu0 0.0
    %1077 = vmatpush1.msra.mxu0 %v1041
    %1078 = vmatprep.subr.mxu0 0.0
    %1079 = vmatpush2.msra.mxu0 0.0
    %1080 = vmatprep.subr.mxu0 0.0
    %1081 = vmatpush2.msra.mxu0 0.0
    %1082 = vmatprep.subr.mxu0 0.0
    %1083 = vmatpush2.msra.mxu0 0.0
    %1084 = vmatprep.subr.mxu0 0.0
    %1085 = vmatpush2.msra.mxu0 0.0
    %1086 = vmatprep.subr.mxu0 0.0
    %1087 = vmatpush2.msra.mxu0 0.0
    %1088 = vmatprep.subr.mxu0 0.0
    %1089 = vmatpush2.msra.mxu0 0.0
    %1090 = vmatprep.subr.mxu0 0.0
    %1091 = vmatpush2.msra.mxu0 0.0
    %1092 = vmatprep.subr.mxu0 0.0
    %1093 = vmatpush2.msra.mxu0 0.0
    %1094 = vmatprep.subr.mxu0 0.0
    %1095 = vmatpush2.msra.mxu0 0.0
    %1096 = vmatprep.subr.mxu0 0.0
    %1097 = vmatpush2.msra.mxu0 0.0
    %1098 = vmatprep.subr.mxu0 0.0
    %1099 = vmatpush2.msra.mxu0 0.0
    %1100 = vmatprep.subr.mxu0 0.0
    %1101 = vmatpush2.msra.mxu0 0.0
    %1102 = vmatprep.subr.mxu0 0.0
    %1103 = vmatpush2.msra.mxu0 0.0
    %1104 = vmatprep.subr.mxu0 0.0
    %1105 = vmatpush2.msra.mxu0 0.0
    %1106 = vmatprep.subr.mxu0 0.0
    %1107 = vmatpush2.msra.mxu0 0.0
    %1108 = vmatprep.subr.mxu0 0.0
    %1109 = vmatpush2.msra.mxu0 0.0
    %1110 = vmatprep.mubr.f32.mxu0 0.0
    %1111 = vmatmul.mubr.f32.gmra.mxu0 %v1044
    %v1112 = vpop.f32.mrf.mxu0
    %v1113 = vadd.f32 0.0, %v1112
    %v1114 = vpop.f32.mrf.mxu0
    %1115 = vdwg.mxu0
    %1116 = vrot.lane.b32.xlu0 %v170, 112
    %v1117 = vpop.permute.xlu0 %1116
    %v1120 = vsel %vm178, %v883, 0
    %1122 = vmatprep.subr.mxu0 0.0
    %1123 = vmatpush1.msra.mxu0 0.0
    %1124 = vmatprep.subr.mxu0 0.0
    %1125 = vmatpush1.msra.mxu0 0.0
    %1126 = vmatprep.subr.mxu0 0.0
    %1127 = vmatpush1.msra.mxu0 0.0
    %1128 = vmatprep.subr.mxu0 0.0
    %1129 = vmatpush1.msra.mxu0 0.0
    %1130 = vmatprep.subr.mxu0 0.0
    %1131 = vmatpush1.msra.mxu0 0.0
    %1132 = vmatprep.subr.mxu0 0.0
    %1133 = vmatpush1.msra.mxu0 0.0
    %1134 = vmatprep.subr.mxu0 0.0
    %1135 = vmatpush1.msra.mxu0 0.0
    %1136 = vmatprep.subr.mxu0 0.0
    %1137 = vmatpush1.msra.mxu0 0.0
    %1138 = vmatprep.subr.mxu0 0.0
    %1139 = vmatpush1.msra.mxu0 0.0
    %1140 = vmatprep.subr.mxu0 0.0
    %1141 = vmatpush1.msra.mxu0 0.0
    %1142 = vmatprep.subr.mxu0 0.0
    %1143 = vmatpush1.msra.mxu0 0.0
    %1144 = vmatprep.subr.mxu0 0.0
    %1145 = vmatpush1.msra.mxu0 0.0
    %1146 = vmatprep.subr.mxu0 0.0
    %1147 = vmatpush1.msra.mxu0 0.0
    %1148 = vmatprep.subr.mxu0 0.0
    %1149 = vmatpush1.msra.mxu0 0.0
    %1150 = vmatprep.subr.mxu0 0.0
    %1151 = vmatpush1.msra.mxu0 0.0
    %1152 = vmatprep.subr.mxu0 0.0
    %1153 = vmatpush1.msra.mxu0 %v1117
    %1154 = vmatprep.subr.mxu0 0.0
    %1155 = vmatpush2.msra.mxu0 0.0
    %1156 = vmatprep.subr.mxu0 0.0
    %1157 = vmatpush2.msra.mxu0 0.0
    %1158 = vmatprep.subr.mxu0 0.0
    %1159 = vmatpush2.msra.mxu0 0.0
    %1160 = vmatprep.subr.mxu0 0.0
    %1161 = vmatpush2.msra.mxu0 0.0
    %1162 = vmatprep.subr.mxu0 0.0
    %1163 = vmatpush2.msra.mxu0 0.0
    %1164 = vmatprep.subr.mxu0 0.0
    %1165 = vmatpush2.msra.mxu0 0.0
    %1166 = vmatprep.subr.mxu0 0.0
    %1167 = vmatpush2.msra.mxu0 0.0
    %1168 = vmatprep.subr.mxu0 0.0
    %1169 = vmatpush2.msra.mxu0 0.0
    %1170 = vmatprep.subr.mxu0 0.0
    %1171 = vmatpush2.msra.mxu0 0.0
    %1172 = vmatprep.subr.mxu0 0.0
    %1173 = vmatpush2.msra.mxu0 0.0
    %1174 = vmatprep.subr.mxu0 0.0
    %1175 = vmatpush2.msra.mxu0 0.0
    %1176 = vmatprep.subr.mxu0 0.0
    %1177 = vmatpush2.msra.mxu0 0.0
    %1178 = vmatprep.subr.mxu0 0.0
    %1179 = vmatpush2.msra.mxu0 0.0
    %1180 = vmatprep.subr.mxu0 0.0
    %1181 = vmatpush2.msra.mxu0 0.0
    %1182 = vmatprep.subr.mxu0 0.0
    %1183 = vmatpush2.msra.mxu0 0.0
    %1184 = vmatprep.subr.mxu0 0.0
    %1185 = vmatpush2.msra.mxu0 0.0
    %1186 = vmatprep.mubr.f32.mxu0 0.0
    %1187 = vmatmul.mubr.f32.gmra.mxu0 %v1120
    %v1188 = vpop.f32.mrf.mxu0
    %v1189 = vadd.f32 0.0, %v1188
    %v1190 = vpop.f32.mrf.mxu0
    %1191 = vdwg.mxu0
    %1192 = vrot.lane.b32.xlu0 %v171, 112
    %v1193 = vpop.permute.xlu0 %1192
    %v1196 = vsel %vm178, %v884, 0
    %1198 = vmatprep.subr.mxu0 0.0
    %1199 = vmatpush1.msra.mxu0 0.0
    %1200 = vmatprep.subr.mxu0 0.0
    %1201 = vmatpush1.msra.mxu0 0.0
    %1202 = vmatprep.subr.mxu0 0.0
    %1203 = vmatpush1.msra.mxu0 0.0
    %1204 = vmatprep.subr.mxu0 0.0
    %1205 = vmatpush1.msra.mxu0 0.0
    %1206 = vmatprep.subr.mxu0 0.0
    %1207 = vmatpush1.msra.mxu0 0.0
    %1208 = vmatprep.subr.mxu0 0.0
    %1209 = vmatpush1.msra.mxu0 0.0
    %1210 = vmatprep.subr.mxu0 0.0
    %1211 = vmatpush1.msra.mxu0 0.0
    %1212 = vmatprep.subr.mxu0 0.0
    %1213 = vmatpush1.msra.mxu0 0.0
    %1214 = vmatprep.subr.mxu0 0.0
    %1215 = vmatpush1.msra.mxu0 0.0
    %1216 = vmatprep.subr.mxu0 0.0
    %1217 = vmatpush1.msra.mxu0 0.0
    %1218 = vmatprep.subr.mxu0 0.0
    %1219 = vmatpush1.msra.mxu0 0.0
    %1220 = vmatprep.subr.mxu0 0.0
    %1221 = vmatpush1.msra.mxu0 0.0
    %1222 = vmatprep.subr.mxu0 0.0
    %1223 = vmatpush1.msra.mxu0 0.0
    %1224 = vmatprep.subr.mxu0 0.0
    %1225 = vmatpush1.msra.mxu0 0.0
    %1226 = vmatprep.subr.mxu0 0.0
    %1227 = vmatpush1.msra.mxu0 0.0
    %1228 = vmatprep.subr.mxu0 0.0
    %1229 = vmatpush1.msra.mxu0 %v1193
    %1230 = vmatprep.subr.mxu0 0.0
    %1231 = vmatpush2.msra.mxu0 0.0
    %1232 = vmatprep.subr.mxu0 0.0
    %1233 = vmatpush2.msra.mxu0 0.0
    %1234 = vmatprep.subr.mxu0 0.0
    %1235 = vmatpush2.msra.mxu0 0.0
    %1236 = vmatprep.subr.mxu0 0.0
    %1237 = vmatpush2.msra.mxu0 0.0
    %1238 = vmatprep.subr.mxu0 0.0
    %1239 = vmatpush2.msra.mxu0 0.0
    %1240 = vmatprep.subr.mxu0 0.0
    %1241 = vmatpush2.msra.mxu0 0.0
    %1242 = vmatprep.subr.mxu0 0.0
    %1243 = vmatpush2.msra.mxu0 0.0
    %1244 = vmatprep.subr.mxu0 0.0
    %1245 = vmatpush2.msra.mxu0 0.0
    %1246 = vmatprep.subr.mxu0 0.0
    %1247 = vmatpush2.msra.mxu0 0.0
    %1248 = vmatprep.subr.mxu0 0.0
    %1249 = vmatpush2.msra.mxu0 0.0
    %1250 = vmatprep.subr.mxu0 0.0
    %1251 = vmatpush2.msra.mxu0 0.0
    %1252 = vmatprep.subr.mxu0 0.0
    %1253 = vmatpush2.msra.mxu0 0.0
    %1254 = vmatprep.subr.mxu0 0.0
    %1255 = vmatpush2.msra.mxu0 0.0
    %1256 = vmatprep.subr.mxu0 0.0
    %1257 = vmatpush2.msra.mxu0 0.0
    %1258 = vmatprep.subr.mxu0 0.0
    %1259 = vmatpush2.msra.mxu0 0.0
    %1260 = vmatprep.subr.mxu0 0.0
    %1261 = vmatpush2.msra.mxu0 0.0
    %1262 = vmatprep.mubr.f32.mxu0 0.0
    %1263 = vmatmul.mubr.f32.gmra.mxu0 %v1196
    %v1264 = vpop.f32.mrf.mxu0
    %v1265 = vadd.f32 0.0, %v1264
    %v1266 = vpop.f32.mrf.mxu0
    %1267 = vdwg.mxu0
    %1268 = vrot.lane.b32.xlu0 %v172, 112
    %v1269 = vpop.permute.xlu0 %1268
    %v1272 = vsel %vm178, %v885, 0
    %1274 = vmatprep.subr.mxu0 0.0
    %1275 = vmatpush1.msra.mxu0 0.0
    %1276 = vmatprep.subr.mxu0 0.0
    %1277 = vmatpush1.msra.mxu0 0.0
    %1278 = vmatprep.subr.mxu0 0.0
    %1279 = vmatpush1.msra.mxu0 0.0
    %1280 = vmatprep.subr.mxu0 0.0
    %1281 = vmatpush1.msra.mxu0 0.0
    %1282 = vmatprep.subr.mxu0 0.0
    %1283 = vmatpush1.msra.mxu0 0.0
    %1284 = vmatprep.subr.mxu0 0.0
    %1285 = vmatpush1.msra.mxu0 0.0
    %1286 = vmatprep.subr.mxu0 0.0
    %1287 = vmatpush1.msra.mxu0 0.0
    %1288 = vmatprep.subr.mxu0 0.0
    %1289 = vmatpush1.msra.mxu0 0.0
    %1290 = vmatprep.subr.mxu0 0.0
    %1291 = vmatpush1.msra.mxu0 0.0
    %1292 = vmatprep.subr.mxu0 0.0
    %1293 = vmatpush1.msra.mxu0 0.0
    %1294 = vmatprep.subr.mxu0 0.0
    %1295 = vmatpush1.msra.mxu0 0.0
    %1296 = vmatprep.subr.mxu0 0.0
    %1297 = vmatpush1.msra.mxu0 0.0
    %1298 = vmatprep.subr.mxu0 0.0
    %1299 = vmatpush1.msra.mxu0 0.0
    %1300 = vmatprep.subr.mxu0 0.0
    %1301 = vmatpush1.msra.mxu0 0.0
    %1302 = vmatprep.subr.mxu0 0.0
    %1303 = vmatpush1.msra.mxu0 0.0
    %1304 = vmatprep.subr.mxu0 0.0
    %1305 = vmatpush1.msra.mxu0 %v1269
    %1306 = vmatprep.subr.mxu0 0.0
    %1307 = vmatpush2.msra.mxu0 0.0
    %1308 = vmatprep.subr.mxu0 0.0
    %1309 = vmatpush2.msra.mxu0 0.0
    %1310 = vmatprep.subr.mxu0 0.0
    %1311 = vmatpush2.msra.mxu0 0.0
    %1312 = vmatprep.subr.mxu0 0.0
    %1313 = vmatpush2.msra.mxu0 0.0
    %1314 = vmatprep.subr.mxu0 0.0
    %1315 = vmatpush2.msra.mxu0 0.0
    %1316 = vmatprep.subr.mxu0 0.0
    %1317 = vmatpush2.msra.mxu0 0.0
    %1318 = vmatprep.subr.mxu0 0.0
    %1319 = vmatpush2.msra.mxu0 0.0
    %1320 = vmatprep.subr.mxu0 0.0
    %1321 = vmatpush2.msra.mxu0 0.0
    %1322 = vmatprep.subr.mxu0 0.0
    %1323 = vmatpush2.msra.mxu0 0.0
    %1324 = vmatprep.subr.mxu0 0.0
    %1325 = vmatpush2.msra.mxu0 0.0
    %1326 = vmatprep.subr.mxu0 0.0
    %1327 = vmatpush2.msra.mxu0 0.0
    %1328 = vmatprep.subr.mxu0 0.0
    %1329 = vmatpush2.msra.mxu0 0.0
    %1330 = vmatprep.subr.mxu0 0.0
    %1331 = vmatpush2.msra.mxu0 0.0
    %1332 = vmatprep.subr.mxu0 0.0
    %1333 = vmatpush2.msra.mxu0 0.0
    %1334 = vmatprep.subr.mxu0 0.0
    %1335 = vmatpush2.msra.mxu0 0.0
    %1336 = vmatprep.subr.mxu0 0.0
    %1337 = vmatpush2.msra.mxu0 0.0
    %1338 = vmatprep.mubr.f32.mxu0 0.0
    %1339 = vmatmul.mubr.f32.gmra.mxu0 %v1272
    %v1340 = vpop.f32.mrf.mxu0
    %v1341 = vadd.f32 0.0, %v1340
    %v1342 = vpop.f32.mrf.mxu0
    %1343 = vdwg.mxu0
    %1344 = vrot.lane.b32.xlu0 %v173, 112
    %v1345 = vpop.permute.xlu0 %1344
    %v1348 = vsel %vm178, %v886, 0
    %1350 = vmatprep.subr.mxu0 0.0
    %1351 = vmatpush1.msra.mxu0 0.0
    %1352 = vmatprep.subr.mxu0 0.0
    %1353 = vmatpush1.msra.mxu0 0.0
    %1354 = vmatprep.subr.mxu0 0.0
    %1355 = vmatpush1.msra.mxu0 0.0
    %1356 = vmatprep.subr.mxu0 0.0
    %1357 = vmatpush1.msra.mxu0 0.0
    %1358 = vmatprep.subr.mxu0 0.0
    %1359 = vmatpush1.msra.mxu0 0.0
    %1360 = vmatprep.subr.mxu0 0.0
    %1361 = vmatpush1.msra.mxu0 0.0
    %1362 = vmatprep.subr.mxu0 0.0
    %1363 = vmatpush1.msra.mxu0 0.0
    %1364 = vmatprep.subr.mxu0 0.0
    %1365 = vmatpush1.msra.mxu0 0.0
    %1366 = vmatprep.subr.mxu0 0.0
    %1367 = vmatpush1.msra.mxu0 0.0
    %1368 = vmatprep.subr.mxu0 0.0
    %1369 = vmatpush1.msra.mxu0 0.0
    %1370 = vmatprep.subr.mxu0 0.0
    %1371 = vmatpush1.msra.mxu0 0.0
    %1372 = vmatprep.subr.mxu0 0.0
    %1373 = vmatpush1.msra.mxu0 0.0
    %1374 = vmatprep.subr.mxu0 0.0
    %1375 = vmatpush1.msra.mxu0 0.0
    %1376 = vmatprep.subr.mxu0 0.0
    %1377 = vmatpush1.msra.mxu0 0.0
    %1378 = vmatprep.subr.mxu0 0.0
    %1379 = vmatpush1.msra.mxu0 0.0
    %1380 = vmatprep.subr.mxu0 0.0
    %1381 = vmatpush1.msra.mxu0 %v1345
    %1382 = vmatprep.subr.mxu0 0.0
    %1383 = vmatpush2.msra.mxu0 0.0
    %1384 = vmatprep.subr.mxu0 0.0
    %1385 = vmatpush2.msra.mxu0 0.0
    %1386 = vmatprep.subr.mxu0 0.0
    %1387 = vmatpush2.msra.mxu0 0.0
    %1388 = vmatprep.subr.mxu0 0.0
    %1389 = vmatpush2.msra.mxu0 0.0
    %1390 = vmatprep.subr.mxu0 0.0
    %1391 = vmatpush2.msra.mxu0 0.0
    %1392 = vmatprep.subr.mxu0 0.0
    %1393 = vmatpush2.msra.mxu0 0.0
    %1394 = vmatprep.subr.mxu0 0.0
    %1395 = vmatpush2.msra.mxu0 0.0
    %1396 = vmatprep.subr.mxu0 0.0
    %1397 = vmatpush2.msra.mxu0 0.0
    %1398 = vmatprep.subr.mxu0 0.0
    %1399 = vmatpush2.msra.mxu0 0.0
    %1400 = vmatprep.subr.mxu0 0.0
    %1401 = vmatpush2.msra.mxu0 0.0
    %1402 = vmatprep.subr.mxu0 0.0
    %1403 = vmatpush2.msra.mxu0 0.0
    %1404 = vmatprep.subr.mxu0 0.0
    %1405 = vmatpush2.msra.mxu0 0.0
    %1406 = vmatprep.subr.mxu0 0.0
    %1407 = vmatpush2.msra.mxu0 0.0
    %1408 = vmatprep.subr.mxu0 0.0
    %1409 = vmatpush2.msra.mxu0 0.0
    %1410 = vmatprep.subr.mxu0 0.0
    %1411 = vmatpush2.msra.mxu0 0.0
    %1412 = vmatprep.subr.mxu0 0.0
    %1413 = vmatpush2.msra.mxu0 0.0
    %1414 = vmatprep.mubr.f32.mxu0 0.0
    %1415 = vmatmul.mubr.f32.gmra.mxu0 %v1348
    %v1416 = vpop.f32.mrf.mxu0
    %v1417 = vadd.f32 0.0, %v1416
    %v1418 = vpop.f32.mrf.mxu0
    %1419 = vdwg.mxu0
    %1420 = vrot.lane.b32.xlu0 %v174, 112
    %v1421 = vpop.permute.xlu0 %1420
    %v1424 = vsel %vm178, %v887, 0
    %1426 = vmatprep.subr.mxu0 0.0
    %1427 = vmatpush1.msra.mxu0 0.0
    %1428 = vmatprep.subr.mxu0 0.0
    %1429 = vmatpush1.msra.mxu0 0.0
    %1430 = vmatprep.subr.mxu0 0.0
    %1431 = vmatpush1.msra.mxu0 0.0
    %1432 = vmatprep.subr.mxu0 0.0
    %1433 = vmatpush1.msra.mxu0 0.0
    %1434 = vmatprep.subr.mxu0 0.0
    %1435 = vmatpush1.msra.mxu0 0.0
    %1436 = vmatprep.subr.mxu0 0.0
    %1437 = vmatpush1.msra.mxu0 0.0
    %1438 = vmatprep.subr.mxu0 0.0
    %1439 = vmatpush1.msra.mxu0 0.0
    %1440 = vmatprep.subr.mxu0 0.0
    %1441 = vmatpush1.msra.mxu0 0.0
    %1442 = vmatprep.subr.mxu0 0.0
    %1443 = vmatpush1.msra.mxu0 0.0
    %1444 = vmatprep.subr.mxu0 0.0
    %1445 = vmatpush1.msra.mxu0 0.0
    %1446 = vmatprep.subr.mxu0 0.0
    %1447 = vmatpush1.msra.mxu0 0.0
    %1448 = vmatprep.subr.mxu0 0.0
    %1449 = vmatpush1.msra.mxu0 0.0
    %1450 = vmatprep.subr.mxu0 0.0
    %1451 = vmatpush1.msra.mxu0 0.0
    %1452 = vmatprep.subr.mxu0 0.0
    %1453 = vmatpush1.msra.mxu0 0.0
    %1454 = vmatprep.subr.mxu0 0.0
    %1455 = vmatpush1.msra.mxu0 0.0
    %1456 = vmatprep.subr.mxu0 0.0
    %1457 = vmatpush1.msra.mxu0 %v1421
    %1458 = vmatprep.subr.mxu0 0.0
    %1459 = vmatpush2.msra.mxu0 0.0
    %1460 = vmatprep.subr.mxu0 0.0
    %1461 = vmatpush2.msra.mxu0 0.0
    %1462 = vmatprep.subr.mxu0 0.0
    %1463 = vmatpush2.msra.mxu0 0.0
    %1464 = vmatprep.subr.mxu0 0.0
    %1465 = vmatpush2.msra.mxu0 0.0
    %1466 = vmatprep.subr.mxu0 0.0
    %1467 = vmatpush2.msra.mxu0 0.0
    %1468 = vmatprep.subr.mxu0 0.0
    %1469 = vmatpush2.msra.mxu0 0.0
    %1470 = vmatprep.subr.mxu0 0.0
    %1471 = vmatpush2.msra.mxu0 0.0
    %1472 = vmatprep.subr.mxu0 0.0
    %1473 = vmatpush2.msra.mxu0 0.0
    %1474 = vmatprep.subr.mxu0 0.0
    %1475 = vmatpush2.msra.mxu0 0.0
    %1476 = vmatprep.subr.mxu0 0.0
    %1477 = vmatpush2.msra.mxu0 0.0
    %1478 = vmatprep.subr.mxu0 0.0
    %1479 = vmatpush2.msra.mxu0 0.0
    %1480 = vmatprep.subr.mxu0 0.0
    %1481 = vmatpush2.msra.mxu0 0.0
    %1482 = vmatprep.subr.mxu0 0.0
    %1483 = vmatpush2.msra.mxu0 0.0
    %1484 = vmatprep.subr.mxu0 0.0
    %1485 = vmatpush2.msra.mxu0 0.0
    %1486 = vmatprep.subr.mxu0 0.0
    %1487 = vmatpush2.msra.mxu0 0.0
    %1488 = vmatprep.subr.mxu0 0.0
    %1489 = vmatpush2.msra.mxu0 0.0
    %1490 = vmatprep.mubr.f32.mxu0 0.0
    %1491 = vmatmul.mubr.f32.gmra.mxu0 %v1424
    %v1492 = vpop.f32.mrf.mxu0
    %v1493 = vadd.f32 0.0, %v1492
    %v1494 = vpop.f32.mrf.mxu0
    %1495 = vdwg.mxu0
    %1496 = vst.msk [vmem:[#allocation3] sm:$0xff] %vm178, %v961
    %1498 = vrot.lane.b32.xlu0 %v1037, 8
    %v1499 = vpop.permute.xlu0 %1498
    %vm1501 = vcmask 130112
    %1502 = vst.msk [vmem:[#allocation3] sm:$0xff] %vm1501, %v1499
    %1504 = vrot.lane.b32.xlu0 %v1113, 16
    %v1505 = vpop.permute.xlu0 %1504
    %vm1507 = vcmask 195712
    %1508 = vst.msk [vmem:[#allocation3] sm:$0xff] %vm1507, %v1505
    %1510 = vrot.lane.b32.xlu0 %v1189, 24
    %v1511 = vpop.permute.xlu0 %1510
    %vm1513 = vcmask 261312
    %1514 = vst.msk [vmem:[#allocation3] sm:$0xff] %vm1513, %v1511
    %1515 = vst.msk [vmem:[#allocation3 + $0x8] sm:$0xff] %vm178, %v1265
    %1517 = vrot.lane.b32.xlu0 %v1341, 8
    %v1518 = vpop.permute.xlu0 %1517
    %1520 = vst.msk [vmem:[#allocation3 + $0x8] sm:$0xff] %vm1501, %v1518
    %1522 = vrot.lane.b32.xlu0 %v1417, 16
    %v1523 = vpop.permute.xlu0 %1522
    %1525 = vst.msk [vmem:[#allocation3 + $0x8] sm:$0xff] %vm1507, %v1523
    %1527 = vrot.lane.b32.xlu0 %v1493, 24
    %v1528 = vpop.permute.xlu0 %1527
    %1530 = vst.msk [vmem:[#allocation3 + $0x8] sm:$0xff] %vm1513, %v1528
    %v1531 = vld [vmem:[#allocation3] sm:$0xff]
    %v1532 = vld [vmem:[#allocation3 + $0x8] sm:$0xff]
    %v1533 = vld [vmem:[%s2] sm:$0xff]
    %v1534 = vld [vmem:[%s2 + $0x8] sm:$0xff]
    %v1535 = vld [vmem:[%s2 + $0x10] sm:$0xff]
    %v1536 = vld [vmem:[%s2 + $0x18] sm:$0xff]
    %v1537 = vlaneseq
    %v1538 = vshrl.u32 %v1537, 7
    %v1539 = vsub.s32 1, %v1538
    %v1540 = vrot.slane %v40, %v1539
    %v1542 = vsel %vm49, %v1531, 0
    %v1545 = vsel %vm49, %v1532, 0
    %1547 = vmatprep.subr.mxu0 0.0
    %1548 = vmatpush1.msra.mxu0 0.0
    %1549 = vmatprep.subr.mxu0 0.0
    %1550 = vmatpush1.msra.mxu0 0.0
    %1551 = vmatprep.subr.mxu0 0.0
    %1552 = vmatpush1.msra.mxu0 0.0
    %1553 = vmatprep.subr.mxu0 0.0
    %1554 = vmatpush1.msra.mxu0 0.0
    %1555 = vmatprep.subr.mxu0 0.0
    %1556 = vmatpush1.msra.mxu0 0.0
    %1557 = vmatprep.subr.mxu0 0.0
    %1558 = vmatpush1.msra.mxu0 0.0
    %1559 = vmatprep.subr.mxu0 0.0
    %1560 = vmatpush1.msra.mxu0 0.0
    %1561 = vmatprep.subr.mxu0 0.0
    %1562 = vmatpush1.msra.mxu0 0.0
    %1563 = vmatprep.subr.mxu0 0.0
    %1564 = vmatpush1.msra.mxu0 0.0
    %1565 = vmatprep.subr.mxu0 0.0
    %1566 = vmatpush1.msra.mxu0 0.0
    %1567 = vmatprep.subr.mxu0 0.0
    %1568 = vmatpush1.msra.mxu0 0.0
    %1569 = vmatprep.subr.mxu0 0.0
    %1570 = vmatpush1.msra.mxu0 0.0
    %1571 = vmatprep.subr.mxu0 0.0
    %1572 = vmatpush1.msra.mxu0 %v1536
    %1573 = vmatprep.subr.mxu0 0.0
    %1574 = vmatpush1.msra.mxu0 %v1535
    %1575 = vmatprep.subr.mxu0 0.0
    %1576 = vmatpush1.msra.mxu0 %v1534
    %1577 = vmatprep.subr.mxu0 0.0
    %1578 = vmatpush1.msra.mxu0 %v1533
    %1579 = vmatprep.subr.mxu0 0.0
    %1580 = vmatpush2.msra.mxu0 0.0
    %1581 = vmatprep.subr.mxu0 0.0
    %1582 = vmatpush2.msra.mxu0 0.0
    %1583 = vmatprep.subr.mxu0 0.0
    %1584 = vmatpush2.msra.mxu0 0.0
    %1585 = vmatprep.subr.mxu0 0.0
    %1586 = vmatpush2.msra.mxu0 0.0
    %1587 = vmatprep.subr.mxu0 0.0
    %1588 = vmatpush2.msra.mxu0 0.0
    %1589 = vmatprep.subr.mxu0 0.0
    %1590 = vmatpush2.msra.mxu0 0.0
    %1591 = vmatprep.subr.mxu0 0.0
    %1592 = vmatpush2.msra.mxu0 0.0
    %1593 = vmatprep.subr.mxu0 0.0
    %1594 = vmatpush2.msra.mxu0 0.0
    %1595 = vmatprep.subr.mxu0 0.0
    %1596 = vmatpush2.msra.mxu0 0.0
    %1597 = vmatprep.subr.mxu0 0.0
    %1598 = vmatpush2.msra.mxu0 0.0
    %1599 = vmatprep.subr.mxu0 0.0
    %1600 = vmatpush2.msra.mxu0 0.0
    %1601 = vmatprep.subr.mxu0 0.0
    %1602 = vmatpush2.msra.mxu0 0.0
    %1603 = vmatprep.subr.mxu0 0.0
    %1604 = vmatpush2.msra.mxu0 0.0
    %1605 = vmatprep.subr.mxu0 0.0
    %1606 = vmatpush2.msra.mxu0 0.0
    %1607 = vmatprep.subr.mxu0 0.0
    %1608 = vmatpush2.msra.mxu0 0.0
    %1609 = vmatprep.subr.mxu0 0.0
    %1610 = vmatpush2.msra.mxu0 0.0
    %1611 = vmatprep.mubr.f32.mxu0 0.0
    %1612 = vmatmul.mubr.f32.gmra.mxu0 %v1542
    %v1613 = vpop.f32.mrf.mxu0
    %v1614 = vadd.f32 %v1540, %v1613
    %v1615 = vpop.f32.mrf.mxu0
    %1616 = vmatprep.mubr.f32.mxu0 0.0
    %1617 = vmatmul.mubr.f32.gmra.mxu0 %v1545
    %v1618 = vpop.f32.mrf.mxu0
    %v1619 = vadd.f32 %v1540, %v1618
    %v1620 = vpop.f32.mrf.mxu0
    %1621 = vdwg.mxu0
    %v1622 = vadd.f32 %v38, %v1614
    %v1623 = vadd.f32 %v39, %v1619
    %v1624 = vsel %vm49, %v1622, 0.0
    %1625 = vadd.xlane.f32.xlu0 %v1624
    %v1626 = vpop.xlane.xlu0 %1625
    %v1627 = vsel %vm49, %v1623, 0.0
    %1628 = vadd.xlane.f32.xlu0 %v1627
    %v1629 = vpop.xlane.xlu0 %1628
    %v1630 = vrcp.pop 32.0
    %v1631 = vmul.f32 %v1626, %v1630
    %v1632 = vmul.f32 %v1629, %v1630
    %v1633 = vsub.f32 %v1622, %v1631
    %v1634 = vsub.f32 %v1623, %v1632
    %v1635 = vmul.f32 %v1633, %v1633
    %v1636 = vmul.f32 %v1634, %v1634
    %v1637 = vsel %vm49, %v1635, 0.0
    %1638 = vadd.xlane.f32.xlu0 %v1637
    %v1639 = vpop.xlane.xlu0 %1638
    %v1640 = vsel %vm49, %v1636, 0.0
    %1641 = vadd.xlane.f32.xlu0 %v1640
    %v1642 = vpop.xlane.xlu0 %1641
    %v1643 = vmul.f32 %v1639, %v1630
    %v1644 = vmul.f32 %v1642, %v1630
    %v1645 = vadd.f32 %v1643, 1e-05
    %v1646 = vadd.f32 %v1644, 1e-05
    %v1647 = vrsqrt.pop %v1645
    %v1648 = vrsqrt.pop %v1646
    %v1649 = vmul.f32 %v1633, %v1647
    %v1650 = vmul.f32 %v1634, %v1648
    %v1651 = vlaneseq
    %v1652 = vshrl.u32 %v1651, 7
    %v1653 = vsub.s32 2, %v1652
    %v1654 = vrot.slane %v40, %v1653
    %v1655 = vmul.f32 %v1649, %v1654
    %v1656 = vmul.f32 %v1650, %v1654
    %v1657 = vlaneseq
    %v1658 = vshrl.u32 %v1657, 7
    %v1659 = vsub.s32 3, %v1658
    %v1660 = vrot.slane %v40, %v1659
    %v1661 = vadd.f32 %v1655, %v1660
    %v1662 = vadd.f32 %v1656, %v1660
    %v1663 = vld [vmem:[%s3] sm:$0xff]
    %v1664 = vld [vmem:[%s3 + $0x8] sm:$0xff]
    %v1665 = vld [vmem:[%s3 + $0x10] sm:$0xff]
    %v1666 = vld [vmem:[%s3 + $0x18] sm:$0xff]
    %v1667 = vlaneseq
    %v1668 = vshrl.u32 %v1667, 7
    %v1669 = vsub.s32 4, %v1668
    %v1670 = vrot.slane %v40, %v1669
    %v1672 = vsel %vm49, %v1661, 0
    %v1675 = vsel %vm49, %v1662, 0
    %1677 = vmatprep.subr.mxu0 0.0
    %1678 = vmatpush1.msra.mxu0 0.0
    %1679 = vmatprep.subr.mxu0 0.0
    %1680 = vmatpush1.msra.mxu0 0.0
    %1681 = vmatprep.subr.mxu0 0.0
    %1682 = vmatpush1.msra.mxu0 0.0
    %1683 = vmatprep.subr.mxu0 0.0
    %1684 = vmatpush1.msra.mxu0 0.0
    %1685 = vmatprep.subr.mxu0 0.0
    %1686 = vmatpush1.msra.mxu0 0.0
    %1687 = vmatprep.subr.mxu0 0.0
    %1688 = vmatpush1.msra.mxu0 0.0
    %1689 = vmatprep.subr.mxu0 0.0
    %1690 = vmatpush1.msra.mxu0 0.0
    %1691 = vmatprep.subr.mxu0 0.0
    %1692 = vmatpush1.msra.mxu0 0.0
    %1693 = vmatprep.subr.mxu0 0.0
    %1694 = vmatpush1.msra.mxu0 0.0
    %1695 = vmatprep.subr.mxu0 0.0
    %1696 = vmatpush1.msra.mxu0 0.0
    %1697 = vmatprep.subr.mxu0 0.0
    %1698 = vmatpush1.msra.mxu0 0.0
    %1699 = vmatprep.subr.mxu0 0.0
    %1700 = vmatpush1.msra.mxu0 0.0
    %1701 = vmatprep.subr.mxu0 0.0
    %1702 = vmatpush1.msra.mxu0 %v1666
    %1703 = vmatprep.subr.mxu0 0.0
    %1704 = vmatpush1.msra.mxu0 %v1665
    %1705 = vmatprep.subr.mxu0 0.0
    %1706 = vmatpush1.msra.mxu0 %v1664
    %1707 = vmatprep.subr.mxu0 0.0
    %1708 = vmatpush1.msra.mxu0 %v1663
    %1709 = vmatprep.subr.mxu0 0.0
    %1710 = vmatpush2.msra.mxu0 0.0
    %1711 = vmatprep.subr.mxu0 0.0
    %1712 = vmatpush2.msra.mxu0 0.0
    %1713 = vmatprep.subr.mxu0 0.0
    %1714 = vmatpush2.msra.mxu0 0.0
    %1715 = vmatprep.subr.mxu0 0.0
    %1716 = vmatpush2.msra.mxu0 0.0
    %1717 = vmatprep.subr.mxu0 0.0
    %1718 = vmatpush2.msra.mxu0 0.0
    %1719 = vmatprep.subr.mxu0 0.0
    %1720 = vmatpush2.msra.mxu0 0.0
    %1721 = vmatprep.subr.mxu0 0.0
    %1722 = vmatpush2.msra.mxu0 0.0
    %1723 = vmatprep.subr.mxu0 0.0
    %1724 = vmatpush2.msra.mxu0 0.0
    %1725 = vmatprep.subr.mxu0 0.0
    %1726 = vmatpush2.msra.mxu0 0.0
    %1727 = vmatprep.subr.mxu0 0.0
    %1728 = vmatpush2.msra.mxu0 0.0
    %1729 = vmatprep.subr.mxu0 0.0
    %1730 = vmatpush2.msra.mxu0 0.0
    %1731 = vmatprep.subr.mxu0 0.0
    %1732 = vmatpush2.msra.mxu0 0.0
    %1733 = vmatprep.subr.mxu0 0.0
    %1734 = vmatpush2.msra.mxu0 0.0
    %1735 = vmatprep.subr.mxu0 0.0
    %1736 = vmatpush2.msra.mxu0 0.0
    %1737 = vmatprep.subr.mxu0 0.0
    %1738 = vmatpush2.msra.mxu0 0.0
    %1739 = vmatprep.subr.mxu0 0.0
    %1740 = vmatpush2.msra.mxu0 0.0
    %1741 = vmatprep.mubr.f32.mxu0 0.0
    %1742 = vmatmul.mubr.f32.gmra.mxu0 %v1672
    %v1743 = vpop.f32.mrf.mxu0
    %v1744 = vadd.f32 %v1670, %v1743
    %v1745 = vpop.f32.mrf.mxu0
    %1746 = vmatprep.mubr.f32.mxu0 0.0
    %1747 = vmatmul.mubr.f32.gmra.mxu0 %v1675
    %v1748 = vpop.f32.mrf.mxu0
    %v1749 = vadd.f32 %v1670, %v1748
    %v1750 = vpop.f32.mrf.mxu0
    %1751 = vdwg.mxu0
    %v1752 = vmax.f32 %v1744, 0.0
    %v1753 = vmax.f32 %v1749, 0.0
    %v1754 = vld [vmem:[%s4] sm:$0xff]
    %v1755 = vld [vmem:[%s4 + $0x8] sm:$0xff]
    %v1756 = vld [vmem:[%s4 + $0x10] sm:$0xff]
    %v1757 = vld [vmem:[%s4 + $0x18] sm:$0xff]
    %v1758 = vld [vmem:[%s4 + $0x20] sm:$0xff]
    %v1759 = vld [vmem:[%s4 + $0x28] sm:$0xff]
    %v1760 = vld [vmem:[%s4 + $0x30] sm:$0xff]
    %v1761 = vld [vmem:[%s4 + $0x38] sm:$0xff]
    %v1762 = vlaneseq
    %v1763 = vshrl.u32 %v1762, 7
    %v1764 = vsub.s32 5, %v1763
    %v1765 = vrot.slane %v40, %v1764
    %vm1766 = vcmask 523264
    %v1768 = vsel %vm1766, %v1752, 0
    %v1771 = vsel %vm1766, %v1753, 0
    %1773 = vmatprep.subr.mxu0 0.0
    %1774 = vmatpush1.msra.mxu0 0.0
    %1775 = vmatprep.subr.mxu0 0.0
    %1776 = vmatpush1.msra.mxu0 0.0
    %1777 = vmatprep.subr.mxu0 0.0
    %1778 = vmatpush1.msra.mxu0 0.0
    %1779 = vmatprep.subr.mxu0 0.0
    %1780 = vmatpush1.msra.mxu0 0.0
    %1781 = vmatprep.subr.mxu0 0.0
    %1782 = vmatpush1.msra.mxu0 0.0
    %1783 = vmatprep.subr.mxu0 0.0
    %1784 = vmatpush1.msra.mxu0 0.0
    %1785 = vmatprep.subr.mxu0 0.0
    %1786 = vmatpush1.msra.mxu0 0.0
    %1787 = vmatprep.subr.mxu0 0.0
    %1788 = vmatpush1.msra.mxu0 0.0
    %1789 = vmatprep.subr.mxu0 0.0
    %1790 = vmatpush1.msra.mxu0 %v1761
    %1791 = vmatprep.subr.mxu0 0.0
    %1792 = vmatpush1.msra.mxu0 %v1760
    %1793 = vmatprep.subr.mxu0 0.0
    %1794 = vmatpush1.msra.mxu0 %v1759
    %1795 = vmatprep.subr.mxu0 0.0
    %1796 = vmatpush1.msra.mxu0 %v1758
    %1797 = vmatprep.subr.mxu0 0.0
    %1798 = vmatpush1.msra.mxu0 %v1757
    %1799 = vmatprep.subr.mxu0 0.0
    %1800 = vmatpush1.msra.mxu0 %v1756
    %1801 = vmatprep.subr.mxu0 0.0
    %1802 = vmatpush1.msra.mxu0 %v1755
    %1803 = vmatprep.subr.mxu0 0.0
    %1804 = vmatpush1.msra.mxu0 %v1754
    %1805 = vmatprep.subr.mxu0 0.0
    %1806 = vmatpush2.msra.mxu0 0.0
    %1807 = vmatprep.subr.mxu0 0.0
    %1808 = vmatpush2.msra.mxu0 0.0
    %1809 = vmatprep.subr.mxu0 0.0
    %1810 = vmatpush2.msra.mxu0 0.0
    %1811 = vmatprep.subr.mxu0 0.0
    %1812 = vmatpush2.msra.mxu0 0.0
    %1813 = vmatprep.subr.mxu0 0.0
    %1814 = vmatpush2.msra.mxu0 0.0
    %1815 = vmatprep.subr.mxu0 0.0
    %1816 = vmatpush2.msra.mxu0 0.0
    %1817 = vmatprep.subr.mxu0 0.0
    %1818 = vmatpush2.msra.mxu0 0.0
    %1819 = vmatprep.subr.mxu0 0.0
    %1820 = vmatpush2.msra.mxu0 0.0
    %1821 = vmatprep.subr.mxu0 0.0
    %1822 = vmatpush2.msra.mxu0 0.0
    %1823 = vmatprep.subr.mxu0 0.0
    %1824 = vmatpush2.msra.mxu0 0.0
    %1825 = vmatprep.subr.mxu0 0.0
    %1826 = vmatpush2.msra.mxu0 0.0
    %1827 = vmatprep.subr.mxu0 0.0
    %1828 = vmatpush2.msra.mxu0 0.0
    %1829 = vmatprep.subr.mxu0 0.0
    %1830 = vmatpush2.msra.mxu0 0.0
    %1831 = vmatprep.subr.mxu0 0.0
    %1832 = vmatpush2.msra.mxu0 0.0
    %1833 = vmatprep.subr.mxu0 0.0
    %1834 = vmatpush2.msra.mxu0 0.0
    %1835 = vmatprep.subr.mxu0 0.0
    %1836 = vmatpush2.msra.mxu0 0.0
    %1837 = vmatprep.mubr.f32.mxu0 0.0
    %1838 = vmatmul.mubr.f32.gmra.mxu0 %v1768
    %v1839 = vpop.f32.mrf.mxu0
    %v1840 = vadd.f32 %v1765, %v1839
    %v1841 = vpop.f32.mrf.mxu0
    %1842 = vmatprep.mubr.f32.mxu0 0.0
    %1843 = vmatmul.mubr.f32.gmra.mxu0 %v1771
    %v1844 = vpop.f32.mrf.mxu0
    %v1845 = vadd.f32 %v1765, %v1844
    %v1846 = vpop.f32.mrf.mxu0
    %1847 = vdwg.mxu0
    %v1848 = vadd.f32 %v1840, %v1661
    %v1849 = vadd.f32 %v1845, %v1662
    %v1850 = vsel %vm49, %v1848, 0.0
    %1851 = vadd.xlane.f32.xlu0 %v1850
    %v1852 = vpop.xlane.xlu0 %1851
    %v1853 = vsel %vm49, %v1849, 0.0
    %1854 = vadd.xlane.f32.xlu0 %v1853
    %v1855 = vpop.xlane.xlu0 %1854
    %v1856 = vmul.f32 %v1852, %v1630
    %v1857 = vmul.f32 %v1855, %v1630
    %v1858 = vsub.f32 %v1848, %v1856
    %v1859 = vsub.f32 %v1849, %v1857
    %v1860 = vmul.f32 %v1858, %v1858
    %v1861 = vmul.f32 %v1859, %v1859
    %v1862 = vsel %vm49, %v1860, 0.0
    %1863 = vadd.xlane.f32.xlu0 %v1862
    %v1864 = vpop.xlane.xlu0 %1863
    %v1865 = vsel %vm49, %v1861, 0.0
    %1866 = vadd.xlane.f32.xlu0 %v1865
    %v1867 = vpop.xlane.xlu0 %1866
    %v1868 = vmul.f32 %v1864, %v1630
    %v1869 = vmul.f32 %v1867, %v1630
    %v1870 = vadd.f32 %v1868, 1e-05
    %v1871 = vadd.f32 %v1869, 1e-05
    %v1872 = vrsqrt.pop %v1870
    %v1873 = vrsqrt.pop %v1871
    %v1874 = vmul.f32 %v1858, %v1872
    %v1875 = vmul.f32 %v1859, %v1873
    %v1876 = vlaneseq
    %v1877 = vshrl.u32 %v1876, 7
    %v1878 = vsub.s32 6, %v1877
    %v1879 = vrot.slane %v40, %v1878
    %v1880 = vmul.f32 %v1874, %v1879
    %v1881 = vmul.f32 %v1875, %v1879
    %v1882 = vlaneseq
    %v1883 = vshrl.u32 %v1882, 7
    %v1884 = vsub.s32 7, %v1883
    %v1885 = vrot.slane %v40, %v1884
    %v1886 = vadd.f32 %v1880, %v1885
    %v1887 = vadd.f32 %v1881, %v1885
    %1888 = vst.msk [vmem:[#allocation7] sm:$0xff] %vm49, %v1886
    %1889 = vst.msk [vmem:[#allocation7 + $0x8] sm:$0xff] %vm49, %v1887
    // Predicated region
    $region30: #{tpu_custom_call.1} parent=1 // pred_check
      _
    $region31: #{tpu_custom_call.1} parent=1 // pred_check_branch
      %1891 = sbr.rel (0) target = $region33
    $region32: #{tpu_custom_call.1} parent=1 // pred_region
      %s1893 = ssub.s32 256, 256
      %1894 = vsyncadd [#allocation6], %s1893
      %s1895 = sshll.u32 [#allocation7], 4
      %s1896 = int_to_ptr.vmem [resolvable:$true] %s1895
      %1901 = dma.vmem_to_hbm [thread:$0]  %s1896, 256, %s6, [#allocation6], 128, 128, 8
    $region33: #{tpu_custom_call.1} parent=1 // pred_fallthru
      _
    // Predicated region
    $region34: #{tpu_custom_call.1} parent=1 // pred_check
      _
    $region35: #{tpu_custom_call.1} parent=1 // pred_check_branch
      %1903 = sbr.rel (0) target = $region37
    $region36: #{tpu_custom_call.1} parent=1 // pred_region
      %1904 = dma.done [#allocation6], 256
    $region37: #{tpu_custom_call.1} parent=1 // pred_fallthru
      _
    %1905 = vsyncpa [#allocation5], 1
    %1906 = vsyncpa [#allocation6], 1

</llo_original>
